<compile_context>
chip_gen: v7x
topology: tpu7x:2x2x1
jax: 0.10.0
libtpu: 0.0.40
codegen_flags: <defaults>
</compile_context>

<pallas_src>
import functools

import jax
import jax.numpy as jnp
from jax import lax
from jax.experimental import pallas as pl
from jax.experimental.pallas import tpu as pltpu

_BIG = 9999999.0                       # same masking constant as the PyTorch reference
_SENT = 1.0e30                         # "already picked / not yet seen" sentinel
_IMAX = jnp.iinfo(jnp.int32).max


def _round_up(x, m):
    return ((x + m - 1) // m) * m


def _cdiv(a, b):
    return -(-a // b)


def _topk_triplet_kernel(e1_ref, e2_ref, lab1_ref, lab2_ref, sq2p_ref, sq2n_ref,
                         out_ref, *, margin, topk, chunk, n_chunks):
    x1 = e1_ref[...]                                   # (TM, D), original dtype
    x1f = x1.astype(jnp.float32)
    xm2 = x1 * jnp.asarray(-2.0, dtype=x1.dtype)       # fold the -2 of  -2<x,y>  once
    labc = lab1_ref[...]                               # (TM, 1) int32
    tm, d = x1.shape

    local_ids = lax.broadcasted_iota(jnp.int32, (tm, chunk), 1)   # chunk-local column ids

    nt_dims = (((1,), (1,)), ((), ()))                 # (TM,D)x(C,D) -> (TM,C)
    nn_dims = (((1,), (0,)), ((), ()))                 # (TM,C)x(C,D) -> (TM,D)

    def chunk_topk(scores, take_max, col_base):
        """Top-`topk` of a (TM, C) score chunk -> (list[(TM,1) vals], list[(TM,1) idx])."""
        vals, idxs = [], []
        s = scores
        for t in range(topk):
            if take_max:
                best = jnp.max(s, axis=1, keepdims=True)
            else:
                best = jnp.min(s, axis=1, keepdims=True)
            loc = jnp.min(jnp.where(s == best, local_ids, chunk), axis=1, keepdims=True)
            vals.append(best)
            idxs.append(loc + col_base)
            if t + 1 < topk:                           # mask the pick for the next round
                s = jnp.where(local_ids == loc, -_SENT if take_max else _SENT, s)
        return vals, idxs

    def merge_topk(run_v, run_i, new_v, new_i, take_max):
        """Merge two candidate lists, keep the global top-`topk` (first index on ties)."""
        cand_v = list(run_v) + list(new_v)
        cand_i = list(run_i) + list(new_i)
        out_v, out_i = [], []
        for _ in range(topk):
            best = cand_v[0]
            for v in cand_v[1:]:
                best = jnp.maximum(best, v) if take_max else jnp.minimum(best, v)
            sel = jnp.full_like(cand_i[0], _IMAX)
            for v, ix in zip(cand_v, cand_i):
                sel = jnp.minimum(sel, jnp.where(v == best, ix, _IMAX))
            out_v.append(best)
            out_i.append(sel)
            cand_v = [jnp.where(ix == sel, -_SENT if take_max else _SENT, v)
                      for v, ix in zip(cand_v, cand_i)]
        return tuple(out_v), tuple(out_i)

    # ---- pass 1: chunked hard-example mining (running top-k over emb2 column slabs) ----
    def mine(c, carry):
        pv, pi, nv, ni = carry
        col0 = c * chunk
        e2c = e2_ref[c]                                                      # (C, D)
        g = lax.dot_general(xm2, e2c, nt_dims,
                            preferred_element_type=jnp.float32)              # -2<x1,y>
        sim = labc == lab2_ref[pl.ds(c, 1), :]                               # (TM, C) bool
        pos = g + sq2p_ref[pl.ds(c, 1), :] + jnp.where(sim, 0.0, -_BIG)
        neg = g + sq2n_ref[pl.ds(c, 1), :] + jnp.where(sim, _BIG, 0.0)
        cpv, cpi = chunk_topk(pos, True, col0)
        cnv, cni = chunk_topk(neg, False, col0)
        pv, pi = merge_topk(pv, pi, cpv, cpi, True)
        nv, ni = merge_topk(nv, ni, cnv, cni, False)
        return pv, pi, nv, ni

    init = (tuple(jnp.full((tm, 1), -_SENT, jnp.float32) for _ in range(topk)),
            tuple(jnp.full((tm, 1), _IMAX, jnp.int32) for _ in range(topk)),
            tuple(jnp.full((tm, 1), _SENT, jnp.float32) for _ in range(topk)),
            tuple(jnp.full((tm, 1), _IMAX, jnp.int32) for _ in range(topk)))
    _, pi, _, ni = lax.fori_loop(0, n_chunks, mine, init)

    # ---- pass 2: chunked one-hot gather of mean(emb2[idx]) on the MXU ----
    def gather(c, carry):
        gp, gn = carry
        col0 = c * chunk
        e2c = e2_ref[c]                                                      # (C, D)
        ohp = (local_ids == (pi[0] - col0)).astype(jnp.float32)
        ohn = (local_ids == (ni[0] - col0)).astype(jnp.float32)
        for t in range(1, topk):
            ohp = ohp + (local_ids == (pi[t] - col0)).astype(jnp.float32)
            ohn = ohn + (local_ids == (ni[t] - col0)).astype(jnp.float32)
        gp = gp + lax.dot_general(ohp.astype(e2c.dtype), e2c, nn_dims,
                                  preferred_element_type=jnp.float32)
        gn = gn + lax.dot_general(ohn.astype(e2c.dtype), e2c, nn_dims,
                                  preferred_element_type=jnp.float32)
        return gp, gn

    zeros = jnp.zeros((tm, d), jnp.float32)
    gp, gn = lax.fori_loop(0, n_chunks, gather, (zeros, zeros))

    inv_k = 1.0 / float(topk)
    gap = gp * inv_k
    gan = gn * inv_k

    # sqrt only on the (TM, 1) reduced vectors (matches torch: no clamp here).
    dap = x1f - gap
    dan = x1f - gan
    dist_ap = jnp.sqrt(jnp.sum(dap * dap, axis=1, keepdims=True))            # (TM, 1)
    dist_an = jnp.sqrt(jnp.sum(dan * dan, axis=1, keepdims=True))            # (TM, 1)

    # log_softmax over the (ap, an) pair.
    m = jnp.maximum(dist_ap, dist_an)
    lse = m + jnp.log(jnp.exp(dist_ap - m) + jnp.exp(dist_an - m))
    out_ref[...] = (-margin) * (dist_ap - lse) - (1.0 - margin) * (dist_an - lse)


def _pick_vmem_limit(estimate_bytes):
    """Per-generation VMEM ceiling: ~100 MiB on v5e/v6e (128 MiB physical), ~54 MiB on v7x."""
    try:
        cap = int(pltpu.get_tpu_info().vmem_capacity_bytes)
    except Exception:
        cap = 64 * 1024 * 1024            # assume the smallest (v7x per-core VMEM)
    ceiling = min(int(cap * 0.85), 100 * 1024 * 1024)
    return max(32 * 1024 * 1024, min(ceiling, int(estimate_bytes * 1.25)))


def topk_triplet_loss(emb1, emb2, label, *, margin=0.0, normalize_feature=False,
                      skip_mean=False, topk=1, block_rows=256, chunk_cols=512):
    """Pallas TPU forward of TopKTripletLoss.

    emb1, emb2: [N, D] float (f32 or bf16); label: [N] int.
    Returns scalar f32 loss, or per-row [N] losses if skip_mean=True.
    """
    assert emb1.ndim == 2 and emb1.shape == emb2.shape
    n, d = emb1.shape
    assert 1 <= topk <= min(n, 128)
    emb2 = emb2.astype(emb1.dtype)
    label = label.astype(jnp.int32)

    if normalize_feature:
        def _l2(x):
            xf = x.astype(jnp.float32)
            nrm = jnp.maximum(jnp.sqrt(jnp.sum(xf * xf, axis=1, keepdims=True)), 1e-12)
            return (xf / nrm).astype(x.dtype)
        emb1, emb2 = _l2(emb1), _l2(emb2)

    # Row tiling (emb1 side): aim for >= 2 row blocks so both v7x TensorCores get work.
    block_rows = max(8, int(block_rows))
    n8 = _round_up(n, 8)
    n_blocks = max(2 if n8 > 8 else 1, _cdiv(n8, block_rows))
    tm = _round_up(_cdiv(n8, n_blocks), 8)
    rows = _round_up(n, tm)

    # Column tiling (emb2 side): lane-dense chunks, independent of the row padding.
    c_cols = _round_up(min(int(chunk_cols), _round_up(n, 128)), 128)
    cols = _round_up(n, c_cols)
    n_chunks = cols // c_cols

    sentinel = jnp.iinfo(jnp.int32).min        # padded labels never match real ids
    e1p = jnp.pad(emb1, ((0, rows - n), (0, 0)))
    e2p = jnp.pad(emb2, ((0, cols - n), (0, 0)))
    lab1 = jnp.pad(label, (0, rows - n), constant_values=sentinel).reshape(rows, 1)
    lab2 = jnp.pad(label, (0, cols - n), constant_values=sentinel)

    # ||emb2_j||^2 once (f32). Pad handling is folded in here: -2*_BIG keeps padded
    # columns below every real positive candidate, +2*_BIG keeps them above every real
    # negative candidate, so the kernel needs no per-element pad penalty.
    sq2 = jnp.sum(e2p.astype(jnp.float32) ** 2, axis=1)
    col_pad = jnp.arange(cols) >= n
    sq2p = jnp.where(col_pad, -2.0 * _BIG, sq2)
    sq2n = jnp.where(col_pad, 2.0 * _BIG, sq2)

    # Chunked views so the kernel slices column slabs with plain dynamic row indexing.
    e2p = e2p.reshape(n_chunks, c_cols, d)
    lab2 = lab2.reshape(n_chunks, c_cols)
    sq2p = sq2p.reshape(n_chunks, c_cols)
    sq2n = sq2n.reshape(n_chunks, c_cols)

    kernel = functools.partial(_topk_triplet_kernel, margin=float(margin),
                               topk=int(topk), chunk=c_cols, n_chunks=n_chunks)

    # VMEM budget from the actual footprint (resident emb2 worst-case double-buffered,
    # emb1/out blocks, chunked mining temps).
    esz = jnp.dtype(emb1.dtype).itemsize
    est = (2 * cols * d * esz            # resident emb2 (worst case: 2 buffers)
           + 2 * 2 * tm * d * esz        # emb1 row block (double buffered)
           + 8 * tm * c_cols * 4         # live (TM, C) mining temps
           + 6 * tm * d * 4              # (TM, D) f32 temps / gather accumulators
           + 8 * cols * 4)               # label / ||emb2||^2 rows
    vmem_limit = _pick_vmem_limit(est)

    common = dict(
        out_shape=jax.ShapeDtypeStruct((rows, 1), jnp.float32),
        grid=(rows // tm,),
        out_specs=pl.BlockSpec((tm, 1), lambda i: (i, 0)),
        compiler_params=pltpu.CompilerParams(
            dimension_semantics=("parallel",),
            vmem_limit_bytes=int(vmem_limit)),
    )

    def build_in_specs(single_buffer):
        res = {}
        if single_buffer and hasattr(pl, "Buffered"):
            res = dict(pipeline_mode=pl.Buffered(1))
        return [
            pl.BlockSpec((tm, d), lambda i: (i, 0)),                           # emb1 rows
            pl.BlockSpec((n_chunks, c_cols, d), lambda i: (0, 0, 0), **res),   # emb2
            pl.BlockSpec((tm, 1), lambda i: (i, 0)),                           # row labels
            pl.BlockSpec((n_chunks, c_cols), lambda i: (0, 0), **res),         # col labels
            pl.BlockSpec((n_chunks, c_cols), lambda i: (0, 0), **res),         # sq2 (pos)
            pl.BlockSpec((n_chunks, c_cols), lambda i: (0, 0), **res),         # sq2 (neg)
        ]

    loss_rows = None
    # Grid-invariant inputs only need one VMEM buffer; fall back to the default
    # (double-buffered) pipeline if this Pallas version rejects pl.Buffered(1).
    for single_buffer in (True, False):
        try:
            loss_rows = pl.pallas_call(kernel, in_specs=build_in_specs(single_buffer),
                                       **common)(e1p, e2p, lab1, lab2, sq2p, sq2n)
            break
        except Exception:
            if not single_buffer:
                raise

    loss = loss_rows[:n, 0]
    return loss if skip_mean else jnp.mean(loss)


def _reference(emb1, emb2, label, *, margin=0.0, topk=1, normalize_feature=False,
               skip_mean=False):
    """Pure-JAX mirror of the PyTorch TopKTripletLoss forward."""
    e1 = emb1.astype(jnp.float32)
    e2 = emb2.astype(jnp.float32)
    if normalize_feature:
        e1 = e1 / jnp.maximum(jnp.linalg.norm(e1, axis=1, keepdims=True), 1e-12)
        e2 = e2 / jnp.maximum(jnp.linalg.norm(e2, axis=1, keepdims=True), 1e-12)
    diff = e1[:, None, :] - e2[None, :, :]
    mat_dist = jnp.sqrt(jnp.maximum(jnp.sum(diff * diff, axis=-1), 1e-12))
    sim = (label[:, None] == label[None, :]).astype(jnp.float32)
    pos_key = mat_dist - _BIG * (1.0 - sim)
    neg_key = mat_dist + _BIG * sim
    ap_idx = jnp.argsort(-pos_key, axis=1)[:, :topk]   # stable: first index on ties
    an_idx = jnp.argsort(neg_key, axis=1)[:, :topk]
    group_ap = jnp.mean(e2[ap_idx], axis=1)
    group_an = jnp.mean(e2[an_idx], axis=1)
    dist_ap = jnp.sqrt(jnp.sum((e1 - group_ap) ** 2, axis=1))
    dist_an = jnp.sqrt(jnp.sum((e1 - group_an) ** 2, axis=1))
    log_td = jax.nn.log_softmax(jnp.stack([dist_ap, dist_an], axis=1), axis=1)
    loss = -margin * log_td[:, 0] - (1.0 - margin) * log_td[:, 1]
    return loss if skip_mean else jnp.mean(loss)


if __name__ == "__main__":
    key = jax.random.PRNGKey(0)
    k1, k2, k3, k4, k5, k6 = jax.random.split(key, 6)

    # Config A: defaults (margin=0, topK=1, mean reduction), bf16 embeddings.
    N, D = 16, 32
    emb1 = jax.random.normal(k1, (N, D), jnp.float32).astype(jnp.bfloat16)
    emb2 = jax.random.normal(k2, (N, D), jnp.float32).astype(jnp.bfloat16)
    label = jax.random.randint(k3, (N,), 0, 4, dtype=jnp.int32)
    out = jax.block_until_ready(topk_triplet_loss(emb1, emb2, label))
    ref = _reference(emb1, emb2, label)
    assert jnp.allclose(out, ref, rtol=1e-3, atol=1e-4), (out, ref)

    # Config B: margin / topK=2 / skip_mean / normalize paths, with sizes chosen so the
    # kernel runs multiple row blocks, multiple column chunks, and padded rows/columns.
    N2, D2 = 200, 64
    e1b = jax.random.normal(k4, (N2, D2), jnp.float32)
    e2b = jax.random.normal(k5, (N2, D2), jnp.float32)
    labb = jax.random.randint(k6, (N2,), 0, 10, dtype=jnp.int32)
    out2 = jax.block_until_ready(
        topk_triplet_loss(e1b, e2b, labb, margin=0.3, topk=2, skip_mean=True,
                          normalize_feature=True, block_rows=64, chunk_cols=128))
    ref2 = _reference(e1b, e2b, labb, margin=0.3, topk=2, skip_mean=True,
                      normalize_feature=True)
    assert jnp.allclose(out2, ref2, rtol=1e-3, atol=1e-4), (out2, ref2)

    print("KERNEL_OK")
</pallas_src>

<mosaic_0001>
module attributes {stable_mosaic.version = 11 : i64} {
  func.func @_topk_triplet_kernel(%arg0: i32, %arg1: memref<8x32xbf16, #tpu.memory_space<vmem>>, %arg2: memref<1x128x32xbf16, #tpu.memory_space<vmem>>, %arg3: memref<8x1xi32, #tpu.memory_space<vmem>>, %arg4: memref<1x128xi32, #tpu.memory_space<vmem>>, %arg5: memref<1x128xf32, #tpu.memory_space<vmem>>, %arg6: memref<1x128xf32, #tpu.memory_space<vmem>>, %arg7: memref<8x1xf32, #tpu.memory_space<vmem>>) attributes {dimension_semantics = [#tpu.dimension_semantics<parallel>], iteration_bounds = array<i64: 2>, scalar_prefetch = 0 : i64, scratch_operands = 0 : i64, tpu.core_type = #tpu.core_type<tc>, window_params = [{transform_indices = @transform_0, window_bounds = array<i64: 8, 32>}, {pipeline_mode = #tpu.pipeline_mode<synchronous>, transform_indices = @transform_1, window_bounds = array<i64: 1, 128, 32>}, {transform_indices = @transform_2, window_bounds = array<i64: 8, 1>}, {pipeline_mode = #tpu.pipeline_mode<synchronous>, transform_indices = @transform_3, window_bounds = array<i64: 1, 128>}, {pipeline_mode = #tpu.pipeline_mode<synchronous>, transform_indices = @transform_4, window_bounds = array<i64: 1, 128>}, {pipeline_mode = #tpu.pipeline_mode<synchronous>, transform_indices = @transform_5, window_bounds = array<i64: 1, 128>}, {transform_indices = @transform_6, window_bounds = array<i64: 8, 1>}]} {
    %c0 = arith.constant 0 : index
    %c0_0 = arith.constant 0 : index
    %0 = vector.load %arg1[%c0, %c0_0] : memref<8x32xbf16, #tpu.memory_space<vmem>>, vector<8x32xbf16>
    %1 = arith.extf %0 : vector<8x32xbf16> to vector<8x32xf32>
    %cst = arith.constant -2.000000e+00 : bf16
    %2 = vector.broadcast %cst : bf16 to vector<8x32xbf16>
    %3 = arith.mulf %0, %2 : vector<8x32xbf16>
    %c0_1 = arith.constant 0 : index
    %c0_2 = arith.constant 0 : index
    %4 = vector.load %arg3[%c0_1, %c0_2] : memref<8x1xi32, #tpu.memory_space<vmem>>, vector<8x1xi32>
    %5 = tpu.iota {dimensions = array<i32: 1>} : vector<8x128xi32>
    %cst_3 = arith.constant -1.000000e+30 : f32
    %6 = vector.broadcast %cst_3 : f32 to vector<8x1xf32>
    %c2147483647_i32 = arith.constant 2147483647 : i32
    %7 = vector.broadcast %c2147483647_i32 : i32 to vector<8x1xi32>
    %cst_4 = arith.constant 1.000000e+30 : f32
    %8 = vector.broadcast %cst_4 : f32 to vector<8x1xf32>
    %c2147483647_i32_5 = arith.constant 2147483647 : i32
    %9 = vector.broadcast %c2147483647_i32_5 : i32 to vector<8x1xi32>
    %c0_i32 = arith.constant 0 : i32
    %c128_i32 = arith.constant 128 : i32
    %10 = arith.muli %c0_i32, %c128_i32 : i32
    %11 = arith.index_cast %c0_i32 : i32 to index
    %c0_6 = arith.constant 0 : index
    %c0_7 = arith.constant 0 : index
    %12 = vector.load %arg2[%11, %c0_6, %c0_7] : memref<1x128x32xbf16, #tpu.memory_space<vmem>>, vector<1x128x32xbf16>
    %13 = vector.shape_cast %12 : vector<1x128x32xbf16> to vector<128x32xbf16>
    %cst_8 = arith.constant dense<0.000000e+00> : vector<8x128xf32>
    %14 = tpu.matmul %3, %13, %cst_8 {dimension_numbers = #tpu.dot_dimension_numbers<[1], [1], [0], [0], [0, 0, 1, 0], [], []>} : vector<8x32xbf16>, vector<128x32xbf16>, vector<8x128xf32> -> vector<8x128xf32>
    %15 = arith.index_cast %c0_i32 : i32 to index
    %c0_9 = arith.constant 0 : index
    %16 = vector.load %arg4[%15, %c0_9] : memref<1x128xi32, #tpu.memory_space<vmem>>, vector<1x128xi32>
    %17 = vector.broadcast %4 : vector<8x1xi32> to vector<8x128xi32>
    %18 = vector.broadcast %16 : vector<1x128xi32> to vector<8x128xi32>
    %19 = arith.cmpi eq, %17, %18 : vector<8x128xi32>
    %20 = arith.index_cast %c0_i32 : i32 to index
    %c0_10 = arith.constant 0 : index
    %21 = vector.load %arg5[%20, %c0_10] : memref<1x128xf32, #tpu.memory_space<vmem>>, vector<1x128xf32>
    %22 = vector.broadcast %21 : vector<1x128xf32> to vector<8x128xf32>
    %23 = arith.addf %14, %22 : vector<8x128xf32>
    %cst_11 = arith.constant 0.000000e+00 : f32
    %cst_12 = arith.constant 0xCB18967F : f32
    %24 = vector.broadcast %cst_11 : f32 to vector<8x128xf32>
    %25 = vector.broadcast %cst_12 : f32 to vector<8x128xf32>
    %26 = arith.select %19, %24, %25 : vector<8x128xi1>, vector<8x128xf32>
    %27 = arith.addf %23, %26 : vector<8x128xf32>
    %28 = arith.index_cast %c0_i32 : i32 to index
    %c0_13 = arith.constant 0 : index
    %29 = vector.load %arg6[%28, %c0_13] : memref<1x128xf32, #tpu.memory_space<vmem>>, vector<1x128xf32>
    %30 = vector.broadcast %29 : vector<1x128xf32> to vector<8x128xf32>
    %31 = arith.addf %14, %30 : vector<8x128xf32>
    %cst_14 = arith.constant 0x4B18967F : f32
    %cst_15 = arith.constant 0.000000e+00 : f32
    %32 = vector.broadcast %cst_14 : f32 to vector<8x128xf32>
    %33 = vector.broadcast %cst_15 : f32 to vector<8x128xf32>
    %34 = arith.select %19, %32, %33 : vector<8x128xi1>, vector<8x128xf32>
    %35 = arith.addf %31, %34 : vector<8x128xf32>
    %cst_16 = arith.constant dense<0xFF800000> : vector<8xf32>
    %36 = vector.multi_reduction <maximumf>, %27, %cst_16 [1] : vector<8x128xf32> to vector<8xf32>
    %37 = vector.shape_cast %36 : vector<8xf32> to vector<8x1xf32>
    %38 = vector.broadcast %37 : vector<8x1xf32> to vector<8x128xf32>
    %39 = arith.cmpf oeq, %27, %38 : vector<8x128xf32>
    %c128_i32_17 = arith.constant 128 : i32
    %40 = vector.broadcast %c128_i32_17 : i32 to vector<8x128xi32>
    %41 = arith.select %39, %5, %40 : vector<8x128xi1>, vector<8x128xi32>
    %cst_18 = arith.constant dense<2147483647> : vector<8xi32>
    %42 = vector.multi_reduction <minsi>, %41, %cst_18 [1] : vector<8x128xi32> to vector<8xi32>
    %43 = vector.shape_cast %42 : vector<8xi32> to vector<8x1xi32>
    %44 = vector.broadcast %10 : i32 to vector<8x1xi32>
    %45 = arith.addi %43, %44 : vector<8x1xi32>
    %cst_19 = arith.constant dense<0x7F800000> : vector<8xf32>
    %46 = vector.multi_reduction <minimumf>, %35, %cst_19 [1] : vector<8x128xf32> to vector<8xf32>
    %47 = vector.shape_cast %46 : vector<8xf32> to vector<8x1xf32>
    %48 = vector.broadcast %47 : vector<8x1xf32> to vector<8x128xf32>
    %49 = arith.cmpf oeq, %35, %48 : vector<8x128xf32>
    %c128_i32_20 = arith.constant 128 : i32
    %50 = vector.broadcast %c128_i32_20 : i32 to vector<8x128xi32>
    %51 = arith.select %49, %5, %50 : vector<8x128xi1>, vector<8x128xi32>
    %cst_21 = arith.constant dense<2147483647> : vector<8xi32>
    %52 = vector.multi_reduction <minsi>, %51, %cst_21 [1] : vector<8x128xi32> to vector<8xi32>
    %53 = vector.shape_cast %52 : vector<8xi32> to vector<8x1xi32>
    %54 = vector.broadcast %10 : i32 to vector<8x1xi32>
    %55 = arith.addi %53, %54 : vector<8x1xi32>
    %56 = arith.maximumf %6, %37 : vector<8x1xf32>
    %c2147483647_i32_22 = arith.constant 2147483647 : i32
    %57 = vector.broadcast %c2147483647_i32_22 : i32 to vector<8x1xi32>
    %58 = arith.cmpf oeq, %6, %56 : vector<8x1xf32>
    %c2147483647_i32_23 = arith.constant 2147483647 : i32
    %59 = vector.broadcast %c2147483647_i32_23 : i32 to vector<8x1xi32>
    %60 = arith.select %58, %7, %59 : vector<8x1xi1>, vector<8x1xi32>
    %61 = arith.minsi %57, %60 : vector<8x1xi32>
    %62 = arith.cmpf oeq, %37, %56 : vector<8x1xf32>
    %c2147483647_i32_24 = arith.constant 2147483647 : i32
    %63 = vector.broadcast %c2147483647_i32_24 : i32 to vector<8x1xi32>
    %64 = arith.select %62, %45, %63 : vector<8x1xi1>, vector<8x1xi32>
    %65 = arith.minsi %61, %64 : vector<8x1xi32>
    %66 = arith.minimumf %8, %47 : vector<8x1xf32>
    %c2147483647_i32_25 = arith.constant 2147483647 : i32
    %67 = vector.broadcast %c2147483647_i32_25 : i32 to vector<8x1xi32>
    %68 = arith.cmpf oeq, %8, %66 : vector<8x1xf32>
    %c2147483647_i32_26 = arith.constant 2147483647 : i32
    %69 = vector.broadcast %c2147483647_i32_26 : i32 to vector<8x1xi32>
    %70 = arith.select %68, %9, %69 : vector<8x1xi1>, vector<8x1xi32>
    %71 = arith.minsi %67, %70 : vector<8x1xi32>
    %72 = arith.cmpf oeq, %47, %66 : vector<8x1xf32>
    %c2147483647_i32_27 = arith.constant 2147483647 : i32
    %73 = vector.broadcast %c2147483647_i32_27 : i32 to vector<8x1xi32>
    %74 = arith.select %72, %55, %73 : vector<8x1xi1>, vector<8x1xi32>
    %75 = arith.minsi %71, %74 : vector<8x1xi32>
    %c1_i32 = arith.constant 1 : i32
    %cst_28 = arith.constant 0.000000e+00 : f32
    %76 = vector.broadcast %cst_28 : f32 to vector<8x32xf32>
    %c0_i32_29 = arith.constant 0 : i32
    %c128_i32_30 = arith.constant 128 : i32
    %77 = arith.muli %c0_i32_29, %c128_i32_30 : i32
    %78 = arith.index_cast %c0_i32_29 : i32 to index
    %c0_31 = arith.constant 0 : index
    %c0_32 = arith.constant 0 : index
    %79 = vector.load %arg2[%78, %c0_31, %c0_32] : memref<1x128x32xbf16, #tpu.memory_space<vmem>>, vector<1x128x32xbf16>
    %80 = vector.shape_cast %79 : vector<1x128x32xbf16> to vector<128x32xbf16>
    %81 = vector.broadcast %77 : i32 to vector<8x1xi32>
    %82 = arith.subi %65, %81 : vector<8x1xi32>
    %83 = vector.broadcast %82 : vector<8x1xi32> to vector<8x128xi32>
    %84 = arith.cmpi eq, %5, %83 : vector<8x128xi32>
    %85 = arith.extui %84 : vector<8x128xi1> to vector<8x128xi32>
    %86 = arith.sitofp %85 : vector<8x128xi32> to vector<8x128xf32>
    %87 = vector.broadcast %77 : i32 to vector<8x1xi32>
    %88 = arith.subi %75, %87 : vector<8x1xi32>
    %89 = vector.broadcast %88 : vector<8x1xi32> to vector<8x128xi32>
    %90 = arith.cmpi eq, %5, %89 : vector<8x128xi32>
    %91 = arith.extui %90 : vector<8x128xi1> to vector<8x128xi32>
    %92 = arith.sitofp %91 : vector<8x128xi32> to vector<8x128xf32>
    %93 = arith.truncf %86 : vector<8x128xf32> to vector<8x128xbf16>
    %cst_33 = arith.constant dense<0.000000e+00> : vector<8x32xf32>
    %94 = tpu.matmul %93, %80, %cst_33 {dimension_numbers = #tpu.dot_dimension_numbers<[1], [0], [0], [1], [0, 0, 1, 1], [], []>} : vector<8x128xbf16>, vector<128x32xbf16>, vector<8x32xf32> -> vector<8x32xf32>
    %95 = arith.addf %76, %94 : vector<8x32xf32>
    %96 = arith.truncf %92 : vector<8x128xf32> to vector<8x128xbf16>
    %cst_34 = arith.constant dense<0.000000e+00> : vector<8x32xf32>
    %97 = tpu.matmul %96, %80, %cst_34 {dimension_numbers = #tpu.dot_dimension_numbers<[1], [0], [0], [1], [0, 0, 1, 1], [], []>} : vector<8x128xbf16>, vector<128x32xbf16>, vector<8x32xf32> -> vector<8x32xf32>
    %98 = arith.addf %76, %97 : vector<8x32xf32>
    %c1_i32_35 = arith.constant 1 : i32
    %cst_36 = arith.constant 1.000000e+00 : f32
    %99 = vector.broadcast %cst_36 : f32 to vector<8x32xf32>
    %100 = arith.mulf %95, %99 : vector<8x32xf32>
    %cst_37 = arith.constant 1.000000e+00 : f32
    %101 = vector.broadcast %cst_37 : f32 to vector<8x32xf32>
    %102 = arith.mulf %98, %101 : vector<8x32xf32>
    %103 = arith.subf %1, %100 : vector<8x32xf32>
    %104 = arith.subf %1, %102 : vector<8x32xf32>
    %105 = arith.mulf %103, %103 : vector<8x32xf32>
    %cst_38 = arith.constant dense<0.000000e+00> : vector<8xf32>
    %106 = vector.multi_reduction <add>, %105, %cst_38 [1] : vector<8x32xf32> to vector<8xf32>
    %107 = vector.shape_cast %106 : vector<8xf32> to vector<8x1xf32>
    %108 = math.sqrt %107 : vector<8x1xf32>
    %109 = arith.mulf %104, %104 : vector<8x32xf32>
    %cst_39 = arith.constant dense<0.000000e+00> : vector<8xf32>
    %110 = vector.multi_reduction <add>, %109, %cst_39 [1] : vector<8x32xf32> to vector<8xf32>
    %111 = vector.shape_cast %110 : vector<8xf32> to vector<8x1xf32>
    %112 = math.sqrt %111 : vector<8x1xf32>
    %113 = arith.maximumf %108, %112 : vector<8x1xf32>
    %114 = arith.subf %108, %113 : vector<8x1xf32>
    %115 = math.exp %114 : vector<8x1xf32>
    %116 = arith.subf %112, %113 : vector<8x1xf32>
    %117 = math.exp %116 : vector<8x1xf32>
    %118 = arith.addf %115, %117 : vector<8x1xf32>
    %119 = math.log %118 : vector<8x1xf32>
    %120 = arith.addf %113, %119 : vector<8x1xf32>
    %121 = arith.subf %108, %120 : vector<8x1xf32>
    %cst_40 = arith.constant -0.000000e+00 : f32
    %122 = vector.broadcast %cst_40 : f32 to vector<8x1xf32>
    %123 = arith.mulf %122, %121 : vector<8x1xf32>
    %124 = arith.subf %112, %120 : vector<8x1xf32>
    %cst_41 = arith.constant 1.000000e+00 : f32
    %125 = vector.broadcast %cst_41 : f32 to vector<8x1xf32>
    %126 = arith.mulf %125, %124 : vector<8x1xf32>
    %127 = arith.subf %123, %126 : vector<8x1xf32>
    %c0_42 = arith.constant 0 : index
    %c0_43 = arith.constant 0 : index
    %128 = vector.load %arg7[%c0_42, %c0_43] : memref<8x1xf32, #tpu.memory_space<vmem>>, vector<8x1xf32>
    tpu.vector_store %arg7[%c0_42, %c0_43], %127 {strides = array<i32>} : memref<8x1xf32, #tpu.memory_space<vmem>>, vector<8x1xf32>,
    return
  }
  func.func @transform_0(%arg0: i32) -> (i32, i32) {
    %c0_i32 = arith.constant 0 : i32
    %c0_i32_0 = arith.constant 0 : i32
    return %arg0, %c0_i32 : i32, i32
  }
  func.func @transform_1(%arg0: i32) -> (i32, i32, i32) {
    %c0_i32 = arith.constant 0 : i32
    %c0_i32_0 = arith.constant 0 : i32
    %c0_i32_1 = arith.constant 0 : i32
    %c0_i32_2 = arith.constant 0 : i32
    return %c0_i32, %c0_i32_0, %c0_i32_1 : i32, i32, i32
  }
  func.func @transform_2(%arg0: i32) -> (i32, i32) {
    %c0_i32 = arith.constant 0 : i32
    %c0_i32_0 = arith.constant 0 : i32
    return %arg0, %c0_i32 : i32, i32
  }
  func.func @transform_3(%arg0: i32) -> (i32, i32) {
    %c0_i32 = arith.constant 0 : i32
    %c0_i32_0 = arith.constant 0 : i32
    %c0_i32_1 = arith.constant 0 : i32
    return %c0_i32, %c0_i32_0 : i32, i32
  }
  func.func @transform_4(%arg0: i32) -> (i32, i32) {
    %c0_i32 = arith.constant 0 : i32
    %c0_i32_0 = arith.constant 0 : i32
    %c0_i32_1 = arith.constant 0 : i32
    return %c0_i32, %c0_i32_0 : i32, i32
  }
  func.func @transform_5(%arg0: i32) -> (i32, i32) {
    %c0_i32 = arith.constant 0 : i32
    %c0_i32_0 = arith.constant 0 : i32
    %c0_i32_1 = arith.constant 0 : i32
    return %c0_i32, %c0_i32_0 : i32, i32
  }
  func.func @transform_6(%arg0: i32) -> (i32, i32) {
    %c0_i32 = arith.constant 0 : i32
    %c0_i32_0 = arith.constant 0 : i32
    return %arg0, %c0_i32 : i32, i32
  }
}

module attributes {stable_mosaic.version = 11 : i64} {
  func.func @_topk_triplet_kernel(%arg0: i32, %arg1: memref<8x32xbf16, #tpu.memory_space<vmem>>, %arg2: memref<1x128x32xbf16, #tpu.memory_space<vmem>>, %arg3: memref<8x1xi32, #tpu.memory_space<vmem>>, %arg4: memref<1x128xi32, #tpu.memory_space<vmem>>, %arg5: memref<1x128xf32, #tpu.memory_space<vmem>>, %arg6: memref<1x128xf32, #tpu.memory_space<vmem>>, %arg7: memref<8x1xf32, #tpu.memory_space<vmem>>) attributes {dimension_semantics = [#tpu.dimension_semantics<parallel>], iteration_bounds = array<i64: 2>, scalar_prefetch = 0 : i64, scratch_operands = 0 : i64, tpu.core_type = #tpu.core_type<tc>, window_params = [{transform_indices = @transform_0, window_bounds = array<i64: 8, 32>}, {pipeline_mode = #tpu.pipeline_mode<synchronous>, transform_indices = @transform_1, window_bounds = array<i64: 1, 128, 32>}, {transform_indices = @transform_2, window_bounds = array<i64: 8, 1>}, {pipeline_mode = #tpu.pipeline_mode<synchronous>, transform_indices = @transform_3, window_bounds = array<i64: 1, 128>}, {pipeline_mode = #tpu.pipeline_mode<synchronous>, transform_indices = @transform_4, window_bounds = array<i64: 1, 128>}, {pipeline_mode = #tpu.pipeline_mode<synchronous>, transform_indices = @transform_5, window_bounds = array<i64: 1, 128>}, {transform_indices = @transform_6, window_bounds = array<i64: 8, 1>}]} {
    %c0 = arith.constant 0 : index
    %c0_0 = arith.constant 0 : index
    %0 = vector.load %arg1[%c0, %c0_0] : memref<8x32xbf16, #tpu.memory_space<vmem>>, vector<8x32xbf16>
    %1 = arith.extf %0 : vector<8x32xbf16> to vector<8x32xf32>
    %cst = arith.constant -2.000000e+00 : bf16
    %2 = vector.broadcast %cst : bf16 to vector<8x32xbf16>
    %3 = arith.mulf %0, %2 : vector<8x32xbf16>
    %c0_1 = arith.constant 0 : index
    %c0_2 = arith.constant 0 : index
    %4 = vector.load %arg3[%c0_1, %c0_2] : memref<8x1xi32, #tpu.memory_space<vmem>>, vector<8x1xi32>
    %5 = tpu.iota {dimensions = array<i32: 1>} : vector<8x128xi32>
    %cst_3 = arith.constant -1.000000e+30 : f32
    %6 = vector.broadcast %cst_3 : f32 to vector<8x1xf32>
    %c2147483647_i32 = arith.constant 2147483647 : i32
    %7 = vector.broadcast %c2147483647_i32 : i32 to vector<8x1xi32>
    %cst_4 = arith.constant 1.000000e+30 : f32
    %8 = vector.broadcast %cst_4 : f32 to vector<8x1xf32>
    %c2147483647_i32_5 = arith.constant 2147483647 : i32
    %9 = vector.broadcast %c2147483647_i32_5 : i32 to vector<8x1xi32>
    %c0_i32 = arith.constant 0 : i32
    %c128_i32 = arith.constant 128 : i32
    %10 = arith.muli %c0_i32, %c128_i32 : i32
    %11 = arith.index_cast %c0_i32 : i32 to index
    %c0_6 = arith.constant 0 : index
    %c0_7 = arith.constant 0 : index
    %12 = vector.load %arg2[%11, %c0_6, %c0_7] : memref<1x128x32xbf16, #tpu.memory_space<vmem>>, vector<1x128x32xbf16>
    %13 = vector.shape_cast %12 : vector<1x128x32xbf16> to vector<128x32xbf16>
    %cst_8 = arith.constant dense<0.000000e+00> : vector<8x128xf32>
    %14 = tpu.matmul %3, %13, %cst_8 {dimension_numbers = #tpu.dot_dimension_numbers<[1], [1], [0], [0], [0, 0, 1, 0], [], []>} : vector<8x32xbf16>, vector<128x32xbf16>, vector<8x128xf32> -> vector<8x128xf32>
    %15 = arith.index_cast %c0_i32 : i32 to index
    %c0_9 = arith.constant 0 : index
    %16 = vector.load %arg4[%15, %c0_9] : memref<1x128xi32, #tpu.memory_space<vmem>>, vector<1x128xi32>
    %17 = vector.broadcast %4 : vector<8x1xi32> to vector<8x128xi32>
    %18 = vector.broadcast %16 : vector<1x128xi32> to vector<8x128xi32>
    %19 = arith.cmpi eq, %17, %18 : vector<8x128xi32>
    %20 = arith.index_cast %c0_i32 : i32 to index
    %c0_10 = arith.constant 0 : index
    %21 = vector.load %arg5[%20, %c0_10] : memref<1x128xf32, #tpu.memory_space<vmem>>, vector<1x128xf32>
    %22 = vector.broadcast %21 : vector<1x128xf32> to vector<8x128xf32>
    %23 = arith.addf %14, %22 : vector<8x128xf32>
    %cst_11 = arith.constant 0.000000e+00 : f32
    %cst_12 = arith.constant 0xCB18967F : f32
    %24 = vector.broadcast %cst_11 : f32 to vector<8x128xf32>
    %25 = vector.broadcast %cst_12 : f32 to vector<8x128xf32>
    %26 = arith.select %19, %24, %25 : vector<8x128xi1>, vector<8x128xf32>
    %27 = arith.addf %23, %26 : vector<8x128xf32>
    %28 = arith.index_cast %c0_i32 : i32 to index
    %c0_13 = arith.constant 0 : index
    %29 = vector.load %arg6[%28, %c0_13] : memref<1x128xf32, #tpu.memory_space<vmem>>, vector<1x128xf32>
    %30 = vector.broadcast %29 : vector<1x128xf32> to vector<8x128xf32>
    %31 = arith.addf %14, %30 : vector<8x128xf32>
    %cst_14 = arith.constant 0x4B18967F : f32
    %cst_15 = arith.constant 0.000000e+00 : f32
    %32 = vector.broadcast %cst_14 : f32 to vector<8x128xf32>
    %33 = vector.broadcast %cst_15 : f32 to vector<8x128xf32>
    %34 = arith.select %19, %32, %33 : vector<8x128xi1>, vector<8x128xf32>
    %35 = arith.addf %31, %34 : vector<8x128xf32>
    %cst_16 = arith.constant dense<0xFF800000> : vector<8xf32>
    %36 = vector.multi_reduction <maximumf>, %27, %cst_16 [1] : vector<8x128xf32> to vector<8xf32>
    %37 = vector.shape_cast %36 : vector<8xf32> to vector<8x1xf32>
    %38 = vector.broadcast %37 : vector<8x1xf32> to vector<8x128xf32>
    %39 = arith.cmpf oeq, %27, %38 : vector<8x128xf32>
    %c128_i32_17 = arith.constant 128 : i32
    %40 = vector.broadcast %c128_i32_17 : i32 to vector<8x128xi32>
    %41 = arith.select %39, %5, %40 : vector<8x128xi1>, vector<8x128xi32>
    %cst_18 = arith.constant dense<2147483647> : vector<8xi32>
    %42 = vector.multi_reduction <minsi>, %41, %cst_18 [1] : vector<8x128xi32> to vector<8xi32>
    %43 = vector.shape_cast %42 : vector<8xi32> to vector<8x1xi32>
    %44 = vector.broadcast %10 : i32 to vector<8x1xi32>
    %45 = arith.addi %43, %44 : vector<8x1xi32>
    %cst_19 = arith.constant dense<0x7F800000> : vector<8xf32>
    %46 = vector.multi_reduction <minimumf>, %35, %cst_19 [1] : vector<8x128xf32> to vector<8xf32>
    %47 = vector.shape_cast %46 : vector<8xf32> to vector<8x1xf32>
    %48 = vector.broadcast %47 : vector<8x1xf32> to vector<8x128xf32>
    %49 = arith.cmpf oeq, %35, %48 : vector<8x128xf32>
    %c128_i32_20 = arith.constant 128 : i32
    %50 = vector.broadcast %c128_i32_20 : i32 to vector<8x128xi32>
    %51 = arith.select %49, %5, %50 : vector<8x128xi1>, vector<8x128xi32>
    %cst_21 = arith.constant dense<2147483647> : vector<8xi32>
    %52 = vector.multi_reduction <minsi>, %51, %cst_21 [1] : vector<8x128xi32> to vector<8xi32>
    %53 = vector.shape_cast %52 : vector<8xi32> to vector<8x1xi32>
    %54 = vector.broadcast %10 : i32 to vector<8x1xi32>
    %55 = arith.addi %53, %54 : vector<8x1xi32>
    %56 = arith.maximumf %6, %37 : vector<8x1xf32>
    %c2147483647_i32_22 = arith.constant 2147483647 : i32
    %57 = vector.broadcast %c2147483647_i32_22 : i32 to vector<8x1xi32>
    %58 = arith.cmpf oeq, %6, %56 : vector<8x1xf32>
    %c2147483647_i32_23 = arith.constant 2147483647 : i32
    %59 = vector.broadcast %c2147483647_i32_23 : i32 to vector<8x1xi32>
    %60 = arith.select %58, %7, %59 : vector<8x1xi1>, vector<8x1xi32>
    %61 = arith.minsi %57, %60 : vector<8x1xi32>
    %62 = arith.cmpf oeq, %37, %56 : vector<8x1xf32>
    %c2147483647_i32_24 = arith.constant 2147483647 : i32
    %63 = vector.broadcast %c2147483647_i32_24 : i32 to vector<8x1xi32>
    %64 = arith.select %62, %45, %63 : vector<8x1xi1>, vector<8x1xi32>
    %65 = arith.minsi %61, %64 : vector<8x1xi32>
    %66 = arith.minimumf %8, %47 : vector<8x1xf32>
    %c2147483647_i32_25 = arith.constant 2147483647 : i32
    %67 = vector.broadcast %c2147483647_i32_25 : i32 to vector<8x1xi32>
    %68 = arith.cmpf oeq, %8, %66 : vector<8x1xf32>
    %c2147483647_i32_26 = arith.constant 2147483647 : i32
    %69 = vector.broadcast %c2147483647_i32_26 : i32 to vector<8x1xi32>
    %70 = arith.select %68, %9, %69 : vector<8x1xi1>, vector<8x1xi32>
    %71 = arith.minsi %67, %70 : vector<8x1xi32>
    %72 = arith.cmpf oeq, %47, %66 : vector<8x1xf32>
    %c2147483647_i32_27 = arith.constant 2147483647 : i32
    %73 = vector.broadcast %c2147483647_i32_27 : i32 to vector<8x1xi32>
    %74 = arith.select %72, %55, %73 : vector<8x1xi1>, vector<8x1xi32>
    %75 = arith.minsi %71, %74 : vector<8x1xi32>
    %c1_i32 = arith.constant 1 : i32
    %cst_28 = arith.constant 0.000000e+00 : f32
    %76 = vector.broadcast %cst_28 : f32 to vector<8x32xf32>
    %c0_i32_29 = arith.constant 0 : i32
    %c128_i32_30 = arith.constant 128 : i32
    %77 = arith.muli %c0_i32_29, %c128_i32_30 : i32
    %78 = arith.index_cast %c0_i32_29 : i32 to index
    %c0_31 = arith.constant 0 : index
    %c0_32 = arith.constant 0 : index
    %79 = vector.load %arg2[%78, %c0_31, %c0_32] : memref<1x128x32xbf16, #tpu.memory_space<vmem>>, vector<1x128x32xbf16>
    %80 = vector.shape_cast %79 : vector<1x128x32xbf16> to vector<128x32xbf16>
    %81 = vector.broadcast %77 : i32 to vector<8x1xi32>
    %82 = arith.subi %65, %81 : vector<8x1xi32>
    %83 = vector.broadcast %82 : vector<8x1xi32> to vector<8x128xi32>
    %84 = arith.cmpi eq, %5, %83 : vector<8x128xi32>
    %85 = arith.extui %84 : vector<8x128xi1> to vector<8x128xi32>
    %86 = arith.sitofp %85 : vector<8x128xi32> to vector<8x128xf32>
    %87 = vector.broadcast %77 : i32 to vector<8x1xi32>
    %88 = arith.subi %75, %87 : vector<8x1xi32>
    %89 = vector.broadcast %88 : vector<8x1xi32> to vector<8x128xi32>
    %90 = arith.cmpi eq, %5, %89 : vector<8x128xi32>
    %91 = arith.extui %90 : vector<8x128xi1> to vector<8x128xi32>
    %92 = arith.sitofp %91 : vector<8x128xi32> to vector<8x128xf32>
    %93 = arith.truncf %86 : vector<8x128xf32> to vector<8x128xbf16>
    %cst_33 = arith.constant dense<0.000000e+00> : vector<8x32xf32>
    %94 = tpu.matmul %93, %80, %cst_33 {dimension_numbers = #tpu.dot_dimension_numbers<[1], [0], [0], [1], [0, 0, 1, 1], [], []>} : vector<8x128xbf16>, vector<128x32xbf16>, vector<8x32xf32> -> vector<8x32xf32>
    %95 = arith.addf %76, %94 : vector<8x32xf32>
    %96 = arith.truncf %92 : vector<8x128xf32> to vector<8x128xbf16>
    %cst_34 = arith.constant dense<0.000000e+00> : vector<8x32xf32>
    %97 = tpu.matmul %96, %80, %cst_34 {dimension_numbers = #tpu.dot_dimension_numbers<[1], [0], [0], [1], [0, 0, 1, 1], [], []>} : vector<8x128xbf16>, vector<128x32xbf16>, vector<8x32xf32> -> vector<8x32xf32>
    %98 = arith.addf %76, %97 : vector<8x32xf32>
    %c1_i32_35 = arith.constant 1 : i32
    %cst_36 = arith.constant 1.000000e+00 : f32
    %99 = vector.broadcast %cst_36 : f32 to vector<8x32xf32>
    %100 = arith.mulf %95, %99 : vector<8x32xf32>
    %cst_37 = arith.constant 1.000000e+00 : f32
    %101 = vector.broadcast %cst_37 : f32 to vector<8x32xf32>
    %102 = arith.mulf %98, %101 : vector<8x32xf32>
    %103 = arith.subf %1, %100 : vector<8x32xf32>
    %104 = arith.subf %1, %102 : vector<8x32xf32>
    %105 = arith.mulf %103, %103 : vector<8x32xf32>
    %cst_38 = arith.constant dense<0.000000e+00> : vector<8xf32>
    %106 = vector.multi_reduction <add>, %105, %cst_38 [1] : vector<8x32xf32> to vector<8xf32>
    %107 = vector.shape_cast %106 : vector<8xf32> to vector<8x1xf32>
    %108 = math.sqrt %107 : vector<8x1xf32>
    %109 = arith.mulf %104, %104 : vector<8x32xf32>
    %cst_39 = arith.constant dense<0.000000e+00> : vector<8xf32>
    %110 = vector.multi_reduction <add>, %109, %cst_39 [1] : vector<8x32xf32> to vector<8xf32>
    %111 = vector.shape_cast %110 : vector<8xf32> to vector<8x1xf32>
    %112 = math.sqrt %111 : vector<8x1xf32>
    %113 = arith.maximumf %108, %112 : vector<8x1xf32>
    %114 = arith.subf %108, %113 : vector<8x1xf32>
    %115 = math.exp %114 : vector<8x1xf32>
    %116 = arith.subf %112, %113 : vector<8x1xf32>
    %117 = math.exp %116 : vector<8x1xf32>
    %118 = arith.addf %115, %117 : vector<8x1xf32>
    %119 = math.log %118 : vector<8x1xf32>
    %120 = arith.addf %113, %119 : vector<8x1xf32>
    %121 = arith.subf %108, %120 : vector<8x1xf32>
    %cst_40 = arith.constant -0.000000e+00 : f32
    %122 = vector.broadcast %cst_40 : f32 to vector<8x1xf32>
    %123 = arith.mulf %122, %121 : vector<8x1xf32>
    %124 = arith.subf %112, %120 : vector<8x1xf32>
    %cst_41 = arith.constant 1.000000e+00 : f32
    %125 = vector.broadcast %cst_41 : f32 to vector<8x1xf32>
    %126 = arith.mulf %125, %124 : vector<8x1xf32>
    %127 = arith.subf %123, %126 : vector<8x1xf32>
    %c0_42 = arith.constant 0 : index
    %c0_43 = arith.constant 0 : index
    %128 = vector.load %arg7[%c0_42, %c0_43] : memref<8x1xf32, #tpu.memory_space<vmem>>, vector<8x1xf32>
    tpu.vector_store %arg7[%c0_42, %c0_43], %127 {strides = array<i32>} : memref<8x1xf32, #tpu.memory_space<vmem>>, vector<8x1xf32>,
    return
  }
  func.func @transform_0(%arg0: i32) -> (i32, i32) {
    %c0_i32 = arith.constant 0 : i32
    %c0_i32_0 = arith.constant 0 : i32
    return %arg0, %c0_i32 : i32, i32
  }
  func.func @transform_1(%arg0: i32) -> (i32, i32, i32) {
    %c0_i32 = arith.constant 0 : i32
    %c0_i32_0 = arith.constant 0 : i32
    %c0_i32_1 = arith.constant 0 : i32
    %c0_i32_2 = arith.constant 0 : i32
    return %c0_i32, %c0_i32_0, %c0_i32_1 : i32, i32, i32
  }
  func.func @transform_2(%arg0: i32) -> (i32, i32) {
    %c0_i32 = arith.constant 0 : i32
    %c0_i32_0 = arith.constant 0 : i32
    return %arg0, %c0_i32 : i32, i32
  }
  func.func @transform_3(%arg0: i32) -> (i32, i32) {
    %c0_i32 = arith.constant 0 : i32
    %c0_i32_0 = arith.constant 0 : i32
    %c0_i32_1 = arith.constant 0 : i32
    return %c0_i32, %c0_i32_0 : i32, i32
  }
  func.func @transform_4(%arg0: i32) -> (i32, i32) {
    %c0_i32 = arith.constant 0 : i32
    %c0_i32_0 = arith.constant 0 : i32
    %c0_i32_1 = arith.constant 0 : i32
    return %c0_i32, %c0_i32_0 : i32, i32
  }
  func.func @transform_5(%arg0: i32) -> (i32, i32) {
    %c0_i32 = arith.constant 0 : i32
    %c0_i32_0 = arith.constant 0 : i32
    %c0_i32_1 = arith.constant 0 : i32
    return %c0_i32, %c0_i32_0 : i32, i32
  }
  func.func @transform_6(%arg0: i32) -> (i32, i32) {
    %c0_i32 = arith.constant 0 : i32
    %c0_i32_0 = arith.constant 0 : i32
    return %arg0, %c0_i32 : i32, i32
  }
}

</mosaic_0001>

<llo_original>
// kernel: tpu_custom_call.1
$region0: #{tpu_custom_call.1}
  #allocation0 [shape = 'u32[]', space=smem, size = 0x4, offset = 0x4, fixed_abs, tag = 'smem constant byte address 0x4 - core index']
  #allocation1 [shape = 'u32[144,128]{1,0:T(1,128)}', space=vmem, size = 0x12000, scoped, tag = 'internal scratch']
  %s0 = inlined_call_operand.vmem [shape: bf16[16,32], index: 0, kind: input, shape index: {}]
  %s1 = inlined_call_operand.vmem [shape: bf16[1,128,32], index: 1, kind: input, shape index: {}]
  %s2 = inlined_call_operand.vmem [shape: s32[16,1], index: 2, kind: input, shape index: {}]
  %s3 = inlined_call_operand.vmem [shape: s32[1,128], index: 3, kind: input, shape index: {}]
  %s4 = inlined_call_operand.vmem [shape: f32[1,128], index: 4, kind: input, shape index: {}]
  %s5 = inlined_call_operand.vmem [shape: f32[1,128], index: 5, kind: input, shape index: {}]
  %s6 = inlined_call_operand.vmem [shape: f32[16,1], index: 6, kind: output, shape index: {}]
  %s7 = sld [smem:[#allocation0]]
  $region57: #{tpu_custom_call.1} parent=0
    _
  %s9 = ssub.s32 1, %s7
  %s10 = scalar_select 0, %s9, %s7
  loop: start=0, step=1, limit=4
  $region2: #{tpu_custom_call.1} parent=0 // loop_pre_header
    _
  $region3: #{tpu_custom_call.1} parent=0 // loop_header
    %s12 = sphi 0, %s16
    %p13 = scmp.ge.s32.totalorder %s12, 4
    %s22 = sphi 0, %s24
    %s25 = sphi 0, %s22
    %s26 = sphi 0, %s25
    %s42 = sphi 0, %s26
    %s46 = sphi 0, %s46
    %s48 = sphi 0, %s46
    %s49 = sphi 0, %s48
    %s63 = sphi 0, %s49
    %s69 = sphi 0, %s71
    %s72 = sphi 0, %s69
    %s73 = sphi 0, %s72
    %s89 = sphi 0, %s73
    %s93 = sphi 0, %s93
    %s95 = sphi 0, %s93
    %s96 = sphi 0, %s95
    %s110 = sphi 0, %s96
    %s114 = sphi 0, %s114
    %s116 = sphi 0, %s114
    %s117 = sphi 0, %s116
    %s131 = sphi 0, %s117
    %s135 = sphi 0, %s135
    %s137 = sphi 0, %s135
    %s138 = sphi 0, %s137
    %s152 = sphi 0, %s138
    %s158 = sphi 0, %s160
    %s161 = sphi 0, %s158
    %s162 = sphi 0, %s161
    %s178 = sphi 0, %s162
  $region4: #{tpu_custom_call.1} parent=0 // loop_header_branch
    %15 = sbr.rel (%p13) target = $region8
  $region5: #{tpu_custom_call.1} parent=0 // loop_body
    %s17 = ssub.s32 %s12, 1
    %s18 = ssub.s32 %s12, 2
    %s19 = sadd.s32 %s12, 1
    %s20 = ssub.s32 %s12, %s19
    %p21 = scmp.eq.s32.totalorder %s20, 0
    %s23 = sadd.s32 %s22, 1
    %s24 = scalar_select %p21, %s22, %s23
    %p27 = pneg %p21
    %p28 = scmp.eq.s32.totalorder %s12, 1
    %p29 = por %p27, %p28
    %p30 = scmp.ne.s32.totalorder %s22, %s25
    %p31 = scmp.eq.s32.totalorder %s12, 0
    %p32 = por %p30, %p31
    %p33 = scmp.ne.s32.totalorder %s22, %s25
    %p34 = scmp.eq.s32.totalorder %s17, 1
    %p35 = por %p33, %p34
    %p36 = scmp.ne.s32.totalorder %s25, %s26
    %p37 = scmp.eq.s32.totalorder %s17, 0
    %p38 = por %p36, %p37
    %p39 = scmp.ne.s32.totalorder %s25, %s26
    %p40 = scmp.eq.s32.totalorder %s18, 1
    %p41 = por %p39, %p40
    %p43 = scmp.ne.s32.totalorder %s26, %s42
    %p44 = scmp.eq.s32.totalorder %s18, 0
    %p45 = por %p43, %p44
    %s47 = sadd.s32 %s46, 1
    %p50 = scmp.eq.s32.totalorder %s12, 1
    %p51 = scmp.ne.s32.totalorder %s46, %s48
    %p52 = scmp.eq.s32.totalorder %s12, 0
    %p53 = por %p51, %p52
    %p54 = scmp.ne.s32.totalorder %s46, %s48
    %p55 = scmp.eq.s32.totalorder %s17, 1
    %p56 = por %p54, %p55
    %p57 = scmp.ne.s32.totalorder %s48, %s49
    %p58 = scmp.eq.s32.totalorder %s17, 0
    %p59 = por %p57, %p58
    %p60 = scmp.ne.s32.totalorder %s48, %s49
    %p61 = scmp.eq.s32.totalorder %s18, 1
    %p62 = por %p60, %p61
    %p64 = scmp.ne.s32.totalorder %s49, %s63
    %p65 = scmp.eq.s32.totalorder %s18, 0
    %p66 = por %p64, %p65
    %s67 = ssub.s32 %s12, %s19
    %p68 = scmp.eq.s32.totalorder %s67, 0
    %s70 = sadd.s32 %s69, 1
    %s71 = scalar_select %p68, %s69, %s70
    %p74 = pneg %p68
    %p75 = scmp.eq.s32.totalorder %s12, 1
    %p76 = por %p74, %p75
    %p77 = scmp.ne.s32.totalorder %s69, %s72
    %p78 = scmp.eq.s32.totalorder %s12, 0
    %p79 = por %p77, %p78
    %p80 = scmp.ne.s32.totalorder %s69, %s72
    %p81 = scmp.eq.s32.totalorder %s17, 1
    %p82 = por %p80, %p81
    %p83 = scmp.ne.s32.totalorder %s72, %s73
    %p84 = scmp.eq.s32.totalorder %s17, 0
    %p85 = por %p83, %p84
    %p86 = scmp.ne.s32.totalorder %s72, %s73
    %p87 = scmp.eq.s32.totalorder %s18, 1
    %p88 = por %p86, %p87
    %p90 = scmp.ne.s32.totalorder %s73, %s89
    %p91 = scmp.eq.s32.totalorder %s18, 0
    %p92 = por %p90, %p91
    %s94 = sadd.s32 %s93, 1
    %p97 = scmp.eq.s32.totalorder %s12, 1
    %p98 = scmp.ne.s32.totalorder %s93, %s95
    %p99 = scmp.eq.s32.totalorder %s12, 0
    %p100 = por %p98, %p99
    %p101 = scmp.ne.s32.totalorder %s93, %s95
    %p102 = scmp.eq.s32.totalorder %s17, 1
    %p103 = por %p101, %p102
    %p104 = scmp.ne.s32.totalorder %s95, %s96
    %p105 = scmp.eq.s32.totalorder %s17, 0
    %p106 = por %p104, %p105
    %p107 = scmp.ne.s32.totalorder %s95, %s96
    %p108 = scmp.eq.s32.totalorder %s18, 1
    %p109 = por %p107, %p108
    %p111 = scmp.ne.s32.totalorder %s96, %s110
    %p112 = scmp.eq.s32.totalorder %s18, 0
    %p113 = por %p111, %p112
    %s115 = sadd.s32 %s114, 1
    %p118 = scmp.eq.s32.totalorder %s12, 1
    %p119 = scmp.ne.s32.totalorder %s114, %s116
    %p120 = scmp.eq.s32.totalorder %s12, 0
    %p121 = por %p119, %p120
    %p122 = scmp.ne.s32.totalorder %s114, %s116
    %p123 = scmp.eq.s32.totalorder %s17, 1
    %p124 = por %p122, %p123
    %p125 = scmp.ne.s32.totalorder %s116, %s117
    %p126 = scmp.eq.s32.totalorder %s17, 0
    %p127 = por %p125, %p126
    %p128 = scmp.ne.s32.totalorder %s116, %s117
    %p129 = scmp.eq.s32.totalorder %s18, 1
    %p130 = por %p128, %p129
    %p132 = scmp.ne.s32.totalorder %s117, %s131
    %p133 = scmp.eq.s32.totalorder %s18, 0
    %p134 = por %p132, %p133
    %s136 = sadd.s32 %s135, 1
    %p139 = scmp.eq.s32.totalorder %s12, 1
    %p140 = scmp.ne.s32.totalorder %s135, %s137
    %p141 = scmp.eq.s32.totalorder %s12, 0
    %p142 = por %p140, %p141
    %p143 = scmp.ne.s32.totalorder %s135, %s137
    %p144 = scmp.eq.s32.totalorder %s17, 1
    %p145 = por %p143, %p144
    %p146 = scmp.ne.s32.totalorder %s137, %s138
    %p147 = scmp.eq.s32.totalorder %s17, 0
    %p148 = por %p146, %p147
    %p149 = scmp.ne.s32.totalorder %s137, %s138
    %p150 = scmp.eq.s32.totalorder %s18, 1
    %p151 = por %p149, %p150
    %p153 = scmp.ne.s32.totalorder %s138, %s152
    %p154 = scmp.eq.s32.totalorder %s18, 0
    %p155 = por %p153, %p154
    %s156 = ssub.s32 %s12, %s19
    %p157 = scmp.eq.s32.totalorder %s156, 0
    %s159 = sadd.s32 %s158, 1
    %s160 = scalar_select %p157, %s158, %s159
    %p163 = pneg %p157
    %p164 = scmp.eq.s32.totalorder %s12, 1
    %p165 = por %p163, %p164
    %p166 = scmp.ne.s32.totalorder %s158, %s161
    %p167 = scmp.eq.s32.totalorder %s12, 0
    %p168 = por %p166, %p167
    %p169 = scmp.ne.s32.totalorder %s158, %s161
    %p170 = scmp.eq.s32.totalorder %s17, 1
    %p171 = por %p169, %p170
    %p172 = scmp.ne.s32.totalorder %s161, %s162
    %p173 = scmp.eq.s32.totalorder %s17, 0
    %p174 = por %p172, %p173
    %p175 = scmp.ne.s32.totalorder %s161, %s162
    %p176 = scmp.eq.s32.totalorder %s18, 1
    %p177 = por %p175, %p176
    %p179 = scmp.ne.s32.totalorder %s162, %s178
    %p180 = scmp.eq.s32.totalorder %s18, 0
    %p181 = por %p179, %p180
    %p182 = scmp.le.s32.totalorder 1, %s12
    %p183 = scmp.lt.s32.totalorder %s12, 3
    %p184 = pnand %p182, %p183
    %p185 = pneg %p184
    // Predicated region
    $region9: #{tpu_custom_call.1} parent=5 // pred_check
      _
    $region10: #{tpu_custom_call.1} parent=5 // pred_check_branch
      %187 = sbr.rel (%p184) target = $region12
    $region11: #{tpu_custom_call.1} parent=5 // pred_region
      %s188 = ssub.s32 %s12, 1
      // Predicated region
      $region13: #{tpu_custom_call.1} parent=11 // pred_check
        %p189 = pneg %p59
      $region14: #{tpu_custom_call.1} parent=11 // pred_check_branch
        %191 = sbr.rel (%p189) target = $region16
      $region15: #{tpu_custom_call.1} parent=11 // pred_region
        _
      $region16: #{tpu_custom_call.1} parent=11 // pred_fallthru
        _
      // Predicated region
      $region17: #{tpu_custom_call.1} parent=11 // pred_check
        %p192 = pneg %p106
      $region18: #{tpu_custom_call.1} parent=11 // pred_check_branch
        %194 = sbr.rel (%p192) target = $region20
      $region19: #{tpu_custom_call.1} parent=11 // pred_region
        _
      $region20: #{tpu_custom_call.1} parent=11 // pred_fallthru
        _
      // Predicated region
      $region21: #{tpu_custom_call.1} parent=11 // pred_check
        %p195 = pneg %p127
      $region22: #{tpu_custom_call.1} parent=11 // pred_check_branch
        %197 = sbr.rel (%p195) target = $region24
      $region23: #{tpu_custom_call.1} parent=11 // pred_region
        _
      $region24: #{tpu_custom_call.1} parent=11 // pred_fallthru
        _
      // Predicated region
      $region25: #{tpu_custom_call.1} parent=11 // pred_check
        %p198 = pneg %p148
      $region26: #{tpu_custom_call.1} parent=11 // pred_check_branch
        %200 = sbr.rel (%p198) target = $region28
      $region27: #{tpu_custom_call.1} parent=11 // pred_region
        _
      $region28: #{tpu_custom_call.1} parent=11 // pred_fallthru
        _
    $region12: #{tpu_custom_call.1} parent=5 // pred_fallthru
      _
    %p201 = scmp.lt.s32.totalorder %s12, 2
    // Predicated region
    $region29: #{tpu_custom_call.1} parent=5 // pred_check
      %p202 = pneg %p201
    $region30: #{tpu_custom_call.1} parent=5 // pred_check_branch
      %204 = sbr.rel (%p202) target = $region32
    $region31: #{tpu_custom_call.1} parent=5 // pred_region
      // Predicated region
      $region33: #{tpu_custom_call.1} parent=31 // pred_check
        %p205 = pneg %p32
      $region34: #{tpu_custom_call.1} parent=31 // pred_check_branch
        %207 = sbr.rel (%p205) target = $region36
      $region35: #{tpu_custom_call.1} parent=31 // pred_region
        %p208 = scmp.lt.s32.totalorder %s12, 1
        %s209 = scalar_select %p208, %s12, 1
        %s210 = smul.addr %s209, 4
        %s211 = scalar_lea.vmem %s0, %s210
      $region36: #{tpu_custom_call.1} parent=31 // pred_fallthru
        _
      // Predicated region
      $region37: #{tpu_custom_call.1} parent=31 // pred_check
        %p212 = pneg %p79
      $region38: #{tpu_custom_call.1} parent=31 // pred_check_branch
        %214 = sbr.rel (%p212) target = $region40
      $region39: #{tpu_custom_call.1} parent=31 // pred_region
        %p215 = scmp.lt.s32.totalorder %s12, 1
        %s216 = scalar_select %p215, %s12, 1
        %s217 = smul.addr %s216, 8
        %s218 = scalar_lea.vmem %s2, %s217
      $region40: #{tpu_custom_call.1} parent=31 // pred_fallthru
        _
    $region32: #{tpu_custom_call.1} parent=5 // pred_fallthru
      _
    %p219 = scmp.le.s32.totalorder 1, %s12
    %p220 = scmp.lt.s32.totalorder %s12, 3
    %p221 = pnand %p219, %p220
    %p222 = pneg %p221
    // Predicated region
    $region41: #{tpu_custom_call.1} parent=5 // pred_check
      _
    $region42: #{tpu_custom_call.1} parent=5 // pred_check_branch
      %224 = sbr.rel (%p221) target = $region44
    $region43: #{tpu_custom_call.1} parent=5 // pred_region
      %s225 = ssub.s32 %s12, 1
      %p226 = scmp.lt.s32.totalorder %s17, 1
      %s227 = scalar_select %p226, %s17, 1
      %s228 = smul.addr %s227, 4
      %s229 = scalar_lea.vmem %s0, %s228
      %p230 = pneg %p38
      %p231 = pneg %p35
      %p232 = pneg %p59
      %p233 = pneg %p56
      %p234 = scmp.lt.s32.totalorder %s17, 1
      %s235 = scalar_select %p234, %s17, 1
      %s236 = smul.addr %s235, 8
      %s237 = scalar_lea.vmem %s2, %s236
      %p238 = pneg %p85
      %p239 = pneg %p82
      %p240 = pneg %p106
      %p241 = pneg %p103
      %p242 = pneg %p127
      %p243 = pneg %p124
      %p244 = pneg %p148
      %p245 = pneg %p145
      %p246 = pneg %p174
      %p247 = pneg %p171
      %p248 = scmp.lt.s32.totalorder %s17, 1
      %s249 = scalar_select %p248, %s17, 1
      %s250 = smul.addr %s249, 8
      %s251 = scalar_lea.vmem %s6, %s250
      %p252 = scmp.lt.s32.totalorder %s17, 1
      %s253 = scalar_select %p252, %s17, 1
      %s254 = smul.addr %s253, 4
      %s255 = scalar_lea.vmem %s0, %s254
      %p256 = scmp.lt.s32.totalorder %s17, 1
      %s257 = scalar_select %p256, %s17, 1
      %s258 = smul.addr %s257, 8
      %s259 = scalar_lea.vmem %s2, %s258
      %p260 = scmp.lt.s32.totalorder %s17, 1
      %s261 = scalar_select %p260, %s17, 1
      %s262 = smul.addr %s261, 8
      %s263 = scalar_lea.vmem %s6, %s262
      %v266 = vld [vmem:[%s255] sm:$0xf]
      %v267 = vunpack.c.l.bf16 %v266
      %v268 = vmul.bf16 %v266, 3221274624
      %v269 = vld [vmem:[%s259] sm:$0xff]
      %v270 = vlaneseq
      %v271 = vand.u32 %v270, 127
      %v272 = vld [vmem:[%s1] sm:$0xf]
      %v273 = vld [vmem:[%s1 + $0x4] sm:$0xf]
      %v274 = vld [vmem:[%s1 + $0x8] sm:$0xf]
      %v275 = vld [vmem:[%s1 + $0xc] sm:$0xf]
      %v276 = vld [vmem:[%s1 + $0x10] sm:$0xf]
      %v277 = vld [vmem:[%s1 + $0x14] sm:$0xf]
      %v278 = vld [vmem:[%s1 + $0x18] sm:$0xf]
      %v279 = vld [vmem:[%s1 + $0x1c] sm:$0xf]
      %v280 = vld [vmem:[%s1 + $0x20] sm:$0xf]
      %v281 = vld [vmem:[%s1 + $0x24] sm:$0xf]
      %v282 = vld [vmem:[%s1 + $0x28] sm:$0xf]
      %v283 = vld [vmem:[%s1 + $0x2c] sm:$0xf]
      %v284 = vld [vmem:[%s1 + $0x30] sm:$0xf]
      %v285 = vld [vmem:[%s1 + $0x34] sm:$0xf]
      %v286 = vld [vmem:[%s1 + $0x38] sm:$0xf]
      %v287 = vld [vmem:[%s1 + $0x3c] sm:$0xf]
      %v304 = vunpack.c.l.b16 %v272
      %v305 = vunpack.c.l.b16 %v273
      %v306 = vunpack.c.l.b16 %v274
      %v307 = vunpack.c.l.b16 %v275
      %v308 = vunpack.c.l.b16 %v276
      %v309 = vunpack.c.l.b16 %v277
      %v310 = vunpack.c.l.b16 %v278
      %v311 = vunpack.c.l.b16 %v279
      %v312 = vunpack.c.l.b16 %v280
      %v313 = vunpack.c.l.b16 %v281
      %v314 = vunpack.c.l.b16 %v282
      %v315 = vunpack.c.l.b16 %v283
      %v316 = vunpack.c.l.b16 %v284
      %v317 = vunpack.c.l.b16 %v285
      %v318 = vunpack.c.l.b16 %v286
      %v319 = vunpack.c.l.b16 %v287
      %v320 = vpack.c.b16 %v305, %v304
      %v321 = vpack.c.b16 %v307, %v306
      %v322 = vpack.c.b16 %v309, %v308
      %v323 = vpack.c.b16 %v311, %v310
      %v324 = vpack.c.b16 %v313, %v312
      %v325 = vpack.c.b16 %v315, %v314
      %v326 = vpack.c.b16 %v317, %v316
      %v327 = vpack.c.b16 %v319, %v318
      %vm328 = vcmask 261120
      %v330 = vsel %vm328, %v268, 0
      %v333 = vsel %vm328, %v320, 0
      %v336 = vsel %vm328, %v321, 0
      %v339 = vsel %vm328, %v322, 0
      %v342 = vsel %vm328, %v323, 0
      %v345 = vsel %vm328, %v324, 0
      %v348 = vsel %vm328, %v325, 0
      %v351 = vsel %vm328, %v326, 0
      %v354 = vsel %vm328, %v327, 0
      %356 = vmatprep.subr.bf16.mxu0 0
      %357 = vmatpush1.bf16.xpose.msra.mxu0 %v333
      %358 = vmatprep.subr.bf16.mxu0 0
      %359 = vmatpush1.bf16.xpose.msra.mxu0 %v336
      %360 = vmatprep.subr.bf16.mxu0 0
      %361 = vmatpush1.bf16.xpose.msra.mxu0 %v339
      %362 = vmatprep.subr.bf16.mxu0 0
      %363 = vmatpush1.bf16.xpose.msra.mxu0 %v342
      %364 = vmatprep.subr.bf16.mxu0 0
      %365 = vmatpush1.bf16.xpose.msra.mxu0 %v345
      %366 = vmatprep.subr.bf16.mxu0 0
      %367 = vmatpush1.bf16.xpose.msra.mxu0 %v348
      %368 = vmatprep.subr.bf16.mxu0 0
      %369 = vmatpush1.bf16.xpose.msra.mxu0 %v351
      %370 = vmatprep.subr.bf16.mxu0 0
      %371 = vmatpush1.bf16.xpose.msra.mxu0 %v354
      %372 = vmatprep.subr.bf16.mxu0 0
      %373 = vmatpush1.bf16.xpose.msra.mxu0 0
      %374 = vmatprep.subr.bf16.mxu0 0
      %375 = vmatpush1.bf16.xpose.msra.mxu0 0
      %376 = vmatprep.subr.bf16.mxu0 0
      %377 = vmatpush1.bf16.xpose.msra.mxu0 0
      %378 = vmatprep.subr.bf16.mxu0 0
      %379 = vmatpush1.bf16.xpose.msra.mxu0 0
      %380 = vmatprep.subr.bf16.mxu0 0
      %381 = vmatpush1.bf16.xpose.msra.mxu0 0
      %382 = vmatprep.subr.bf16.mxu0 0
      %383 = vmatpush1.bf16.xpose.msra.mxu0 0
      %384 = vmatprep.subr.bf16.mxu0 0
      %385 = vmatpush1.bf16.xpose.msra.mxu0 0
      %386 = vmatprep.subr.bf16.mxu0 0
      %387 = vmatpush1.bf16.xpose.msra.mxu0 0
      %388 = vmatprep.mubr.bf16.mxu0 0
      %389 = vmatmul.mubr.bf16.gmra.mrb[0].mxu0 %v330
      %v390 = vpop.f32.mrb[0].mxu0
      %v391 = vadd.f32 0.0, %v390
      %v392 = vpop.f32.mrb[0].mxu0
      %v393 = vpop.f32.mrb[0].mxu0
      %v394 = vpop.f32.mrb[0].mxu0
      %395 = vdwg.mxu0
      %v396 = vld [vmem:[%s3] sm:$0x1]
      %397 = vset.pattern.permute.xlu0 0
      %398 = vperm.xlu0 %397, %v269
      %v399 = vpop.permute.xlu0 %398
      %v400 = vlaneseq
      %v401 = vshrl.u32 %v400, 7
      %v402 = vsub.s32 0, %v401
      %v403 = vrot.slane %v396, %v402
      %vm404 = vcmp.eq.s32.totalorder %v399, %v403
      %v405 = vld [vmem:[%s4] sm:$0x1]
      %v407 = vlaneseq
      %v408 = vshrl.u32 %v407, 7
      %v409 = vsub.s32 0, %v408
      %v410 = vrot.slane %v405, %v409
      %v412 = vadd.f32 %v391, %v410
      %v413 = vsel %vm404, 0.0, -9999999.0
      %v414 = vadd.f32 %v412, %v413
      %v415 = vld [vmem:[%s5] sm:$0x1]
      %v417 = vlaneseq
      %v418 = vshrl.u32 %v417, 7
      %v419 = vsub.s32 0, %v418
      %v420 = vrot.slane %v415, %v419
      %v422 = vadd.f32 %v391, %v420
      %v423 = vsel %vm404, 9999999.0, 0.0
      %v424 = vadd.f32 %v422, %v423
      %425 = vmax.xlane.f32.xlu0 %v414
      %v426 = vpop.xlane.xlu0 %425
      %vm427 = vcmp.eq.f32.partialorder %v414, %v426
      %v428 = vsel %vm427, %v271, 128
      %v429 = vand.u32 %v428, 65535
      %v430 = vshra.s32 %v428, 16
      %v431 = vcvt.s32.f32 %v429
      %v432 = vcvt.s32.f32 %v430
      %433 = vmin.xlane.f32.xlu0 %v432
      %v434 = vpop.xlane.xlu0 %433
      %vm435 = vcmp.eq.f32.partialorder %v432, %v434
      %v436 = vsel %vm435, %v431, inf
      %437 = vmin.xlane.f32.xlu0 %v436
      %v438 = vpop.xlane.xlu0 %437
      %v439 = vcvt.f32.s32 %v438
      %v440 = vcvt.f32.s32 %v434
      %v441 = vshll.u32 %v440, 16
      %v442 = vadd.s32 %v441, %v439
      %443 = vmin.xlane.f32.xlu0 %v424
      %v444 = vpop.xlane.xlu0 %443
      %vm445 = vcmp.eq.f32.partialorder %v424, %v444
      %v446 = vsel %vm445, %v271, 128
      %v447 = vand.u32 %v446, 65535
      %v448 = vshra.s32 %v446, 16
      %v449 = vcvt.s32.f32 %v447
      %v450 = vcvt.s32.f32 %v448
      %451 = vmin.xlane.f32.xlu0 %v450
      %v452 = vpop.xlane.xlu0 %451
      %vm453 = vcmp.eq.f32.partialorder %v450, %v452
      %v454 = vsel %vm453, %v449, inf
      %455 = vmin.xlane.f32.xlu0 %v454
      %v456 = vpop.xlane.xlu0 %455
      %v457 = vcvt.f32.s32 %v456
      %v458 = vcvt.f32.s32 %v452
      %v459 = vshll.u32 %v458, 16
      %v460 = vadd.s32 %v459, %v457
      %v461 = vmax.f32 %v426, -1e+30
      %vm462 = vcmp.eq.f32.partialorder %v426, %v461
      %v463 = vsel %vm462, %v442, 2147483647
      %v464 = vmin.f32 %v444, 1e+30
      %vm465 = vcmp.eq.f32.partialorder %v444, %v464
      %v466 = vsel %vm465, %v460, 2147483647
      %vm467 = vcmp.eq.s32.totalorder %v271, %v463
      %vm468 = vcmp.eq.s32.totalorder %v271, %v466
      %v469 = vsel %vm467, 1, 0
      %v470 = vcvt.s32.f32 %v469
      %v471 = vpack.c.bf16 %v470, %v470
      %480 = vmatprep.subr.bf16.mxu0 0
      %481 = vmatpush1.bf16.msra.mxu0 %v320
      %482 = vmatprep.subr.bf16.mxu0 0
      %483 = vmatpush1.bf16.msra.mxu0 %v321
      %484 = vmatprep.subr.bf16.mxu0 0
      %485 = vmatpush1.bf16.msra.mxu0 %v322
      %486 = vmatprep.subr.bf16.mxu0 0
      %487 = vmatpush1.bf16.msra.mxu0 %v323
      %488 = vmatprep.subr.bf16.mxu0 0
      %489 = vmatpush1.bf16.msra.mxu0 %v324
      %490 = vmatprep.subr.bf16.mxu0 0
      %491 = vmatpush1.bf16.msra.mxu0 %v325
      %492 = vmatprep.subr.bf16.mxu0 0
      %493 = vmatpush1.bf16.msra.mxu0 %v326
      %494 = vmatprep.subr.bf16.mxu0 0
      %495 = vmatpush1.bf16.msra.mxu0 %v327
      %496 = vmatprep.subr.bf16.mxu0 0
      %497 = vmatpush1.bf16.msra.mxu0 0
      %498 = vmatprep.subr.bf16.mxu0 0
      %499 = vmatpush1.bf16.msra.mxu0 0
      %500 = vmatprep.subr.bf16.mxu0 0
      %501 = vmatpush1.bf16.msra.mxu0 0
      %502 = vmatprep.subr.bf16.mxu0 0
      %503 = vmatpush1.bf16.msra.mxu0 0
      %504 = vmatprep.subr.bf16.mxu0 0
      %505 = vmatpush1.bf16.msra.mxu0 0
      %506 = vmatprep.subr.bf16.mxu0 0
      %507 = vmatpush1.bf16.msra.mxu0 0
      %508 = vmatprep.subr.bf16.mxu0 0
      %509 = vmatpush1.bf16.msra.mxu0 0
      %510 = vmatprep.subr.bf16.mxu0 0
      %511 = vmatpush1.bf16.msra.mxu0 0
      %512 = vmatprep.mubr.bf16.mxu0 0
      %513 = vmatmul.mubr.bf16.gmra.mrb[0].mxu0 %v471
      %v514 = vpop.f32.mrb[0].mxu0
      %v515 = vadd.f32 0.0, %v514
      %v516 = vpop.f32.mrb[0].mxu0
      %v517 = vpop.f32.mrb[0].mxu0
      %v518 = vpop.f32.mrb[0].mxu0
      %519 = vdwg.mxu0
      %v520 = vsel %vm468, 1, 0
      %v521 = vcvt.s32.f32 %v520
      %v522 = vpack.c.bf16 %v521, %v521
      %523 = vmatprep.subr.bf16.mxu0 0
      %524 = vmatpush1.bf16.msra.mxu0 %v320
      %525 = vmatprep.subr.bf16.mxu0 0
      %526 = vmatpush1.bf16.msra.mxu0 %v321
      %527 = vmatprep.subr.bf16.mxu0 0
      %528 = vmatpush1.bf16.msra.mxu0 %v322
      %529 = vmatprep.subr.bf16.mxu0 0
      %530 = vmatpush1.bf16.msra.mxu0 %v323
      %531 = vmatprep.subr.bf16.mxu0 0
      %532 = vmatpush1.bf16.msra.mxu0 %v324
      %533 = vmatprep.subr.bf16.mxu0 0
      %534 = vmatpush1.bf16.msra.mxu0 %v325
      %535 = vmatprep.subr.bf16.mxu0 0
      %536 = vmatpush1.bf16.msra.mxu0 %v326
      %537 = vmatprep.subr.bf16.mxu0 0
      %538 = vmatpush1.bf16.msra.mxu0 %v327
      %539 = vmatprep.subr.bf16.mxu0 0
      %540 = vmatpush1.bf16.msra.mxu0 0
      %541 = vmatprep.subr.bf16.mxu0 0
      %542 = vmatpush1.bf16.msra.mxu0 0
      %543 = vmatprep.subr.bf16.mxu0 0
      %544 = vmatpush1.bf16.msra.mxu0 0
      %545 = vmatprep.subr.bf16.mxu0 0
      %546 = vmatpush1.bf16.msra.mxu0 0
      %547 = vmatprep.subr.bf16.mxu0 0
      %548 = vmatpush1.bf16.msra.mxu0 0
      %549 = vmatprep.subr.bf16.mxu0 0
      %550 = vmatpush1.bf16.msra.mxu0 0
      %551 = vmatprep.subr.bf16.mxu0 0
      %552 = vmatpush1.bf16.msra.mxu0 0
      %553 = vmatprep.subr.bf16.mxu0 0
      %554 = vmatpush1.bf16.msra.mxu0 0
      %555 = vmatprep.mubr.bf16.mxu0 0
      %556 = vmatmul.mubr.bf16.gmra.mrb[0].mxu0 %v522
      %v557 = vpop.f32.mrb[0].mxu0
      %v558 = vadd.f32 0.0, %v557
      %v559 = vpop.f32.mrb[0].mxu0
      %v560 = vpop.f32.mrb[0].mxu0
      %v561 = vpop.f32.mrb[0].mxu0
      %562 = vdwg.mxu0
      %v563 = vsub.f32 %v267, %v515
      %v564 = vsub.f32 %v267, %v558
      %v565 = vmul.f32 %v563, %v563
      %v566 = vsel %vm328, %v565, 0.0
      %567 = vadd.xlane.f32.xlu0 %v566
      %v568 = vpop.xlane.xlu0 %567
      %v569 = vrsqrt.pop %v568
      %v570 = vmul.f32 %v568, %v569
      %vm571 = vcmp.eq.f32.partialorder %v568, inf
      %v572 = vsel %vm571, %v568, %v570
      %vm573 = vcmp.eq.f32.partialorder %v568, 0.0
      %v574 = vand.u32 %v568, 2147483648
      %v575 = vsel %vm573, %v574, %v572
      %v576 = vmul.f32 %v564, %v564
      %v577 = vsel %vm328, %v576, 0.0
      %578 = vadd.xlane.f32.xlu0 %v577
      %v579 = vpop.xlane.xlu0 %578
      %v580 = vrsqrt.pop %v579
      %v581 = vmul.f32 %v579, %v580
      %vm582 = vcmp.eq.f32.partialorder %v579, inf
      %v583 = vsel %vm582, %v579, %v581
      %vm584 = vcmp.eq.f32.partialorder %v579, 0.0
      %v585 = vand.u32 %v579, 2147483648
      %v586 = vsel %vm584, %v585, %v583
      %v587 = vmax.f32 %v575, %v586
      %v588 = vsub.f32 %v575, %v587
      %v589 = vmul.f32 %v588, 1.442695
      %v590 = vpow.pop %v589
      %v591 = vsub.f32 %v586, %v587
      %v592 = vmul.f32 %v591, 1.442695
      %v593 = vpow.pop %v592
      %v594 = vadd.f32 %v590, %v593
      %v595 = vlog2.pop %v594
      %v596 = vmul.f32 %v595, 0.6931472
      %v597 = vadd.f32 %v587, %v596
      %v598 = vsub.f32 %v575, %v597
      %v599 = vmul.f32 %v598, -0.0
      %v600 = vsub.f32 %v586, %v597
      %v601 = vsub.f32 %v599, %v600
      %vm602 = vcmask 7168
      %603 = vst.msk [vmem:[%s263] sm:$0xff] %vm602, %v601
      %p604 = scmp.lt.s32.totalorder %s17, 1
      %s605 = scalar_select %p604, %s17, 1
      %s606 = smul.addr %s605, 8
      %s607 = scalar_lea.vmem %s6, %s606
      // Predicated region
      $region45: #{tpu_custom_call.1} parent=43 // pred_check
        %p608 = pneg %p171
      $region46: #{tpu_custom_call.1} parent=43 // pred_check_branch
        %610 = sbr.rel (%p608) target = $region48
      $region47: #{tpu_custom_call.1} parent=43 // pred_region
        _
      $region48: #{tpu_custom_call.1} parent=43 // pred_fallthru
        _
    $region44: #{tpu_custom_call.1} parent=5 // pred_fallthru
      _
    %p611 = scmp.le.s32.totalorder 2, %s12
    // Predicated region
    $region49: #{tpu_custom_call.1} parent=5 // pred_check
      %p612 = pneg %p611
    $region50: #{tpu_custom_call.1} parent=5 // pred_check_branch
      %614 = sbr.rel (%p612) target = $region52
    $region51: #{tpu_custom_call.1} parent=5 // pred_region
      %s615 = ssub.s32 %s12, 2
      // Predicated region
      $region53: #{tpu_custom_call.1} parent=51 // pred_check
        %p616 = pneg %p177
      $region54: #{tpu_custom_call.1} parent=51 // pred_check_branch
        %618 = sbr.rel (%p616) target = $region56
      $region55: #{tpu_custom_call.1} parent=51 // pred_region
        %p619 = scmp.lt.s32.totalorder %s18, 1
        %s620 = scalar_select %p619, %s18, 1
        %s621 = smul.addr %s620, 8
        %s622 = scalar_lea.vmem %s6, %s621
      $region56: #{tpu_custom_call.1} parent=51 // pred_fallthru
        _
    $region52: #{tpu_custom_call.1} parent=5 // pred_fallthru
      _
  $region6: #{tpu_custom_call.1} parent=0 // loop_footer
    %s16 = sadd.s32 1, %s12
  $region7: #{tpu_custom_call.1} parent=0 // loop_footer_branch
    %11 = sbr.rel target = $region3
  $region8: #{tpu_custom_call.1} parent=0 // loop_exit
    _

// kernel: tpu_custom_call.1
$region0: #{tpu_custom_call.1}
  #allocation0 [shape = 'u32[]', space=smem, size = 0x4, offset = 0x4, fixed_abs, tag = 'smem constant byte address 0x4 - core index']
  #allocation1 [shape = 'u32[144,128]{1,0:T(1,128)}', space=vmem, size = 0x12000, scoped, tag = 'internal scratch']
  %s0 = inlined_call_operand.vmem [shape: bf16[16,32], index: 0, kind: input, shape index: {}]
  %s1 = inlined_call_operand.vmem [shape: bf16[1,128,32], index: 1, kind: input, shape index: {}]
  %s2 = inlined_call_operand.vmem [shape: s32[16,1], index: 2, kind: input, shape index: {}]
  %s3 = inlined_call_operand.vmem [shape: s32[1,128], index: 3, kind: input, shape index: {}]
  %s4 = inlined_call_operand.vmem [shape: f32[1,128], index: 4, kind: input, shape index: {}]
  %s5 = inlined_call_operand.vmem [shape: f32[1,128], index: 5, kind: input, shape index: {}]
  %s6 = inlined_call_operand.vmem [shape: f32[16,1], index: 6, kind: output, shape index: {}]
  %s7 = sld [smem:[#allocation0]]
  $region57: #{tpu_custom_call.1} parent=0
    _
  %s9 = ssub.s32 1, %s7
  %s10 = scalar_select 0, %s9, %s7
  loop: start=0, step=1, limit=4
  $region2: #{tpu_custom_call.1} parent=0 // loop_pre_header
    _
  $region3: #{tpu_custom_call.1} parent=0 // loop_header
    %s12 = sphi 0, %s16
    %p13 = scmp.ge.s32.totalorder %s12, 4
    %s22 = sphi 0, %s24
    %s25 = sphi 0, %s22
    %s26 = sphi 0, %s25
    %s42 = sphi 0, %s26
    %s46 = sphi 0, %s46
    %s48 = sphi 0, %s46
    %s49 = sphi 0, %s48
    %s63 = sphi 0, %s49
    %s69 = sphi 0, %s71
    %s72 = sphi 0, %s69
    %s73 = sphi 0, %s72
    %s89 = sphi 0, %s73
    %s93 = sphi 0, %s93
    %s95 = sphi 0, %s93
    %s96 = sphi 0, %s95
    %s110 = sphi 0, %s96
    %s114 = sphi 0, %s114
    %s116 = sphi 0, %s114
    %s117 = sphi 0, %s116
    %s131 = sphi 0, %s117
    %s135 = sphi 0, %s135
    %s137 = sphi 0, %s135
    %s138 = sphi 0, %s137
    %s152 = sphi 0, %s138
    %s158 = sphi 0, %s160
    %s161 = sphi 0, %s158
    %s162 = sphi 0, %s161
    %s178 = sphi 0, %s162
  $region4: #{tpu_custom_call.1} parent=0 // loop_header_branch
    %15 = sbr.rel (%p13) target = $region8
  $region5: #{tpu_custom_call.1} parent=0 // loop_body
    %s17 = ssub.s32 %s12, 1
    %s18 = ssub.s32 %s12, 2
    %s19 = sadd.s32 %s12, 1
    %s20 = ssub.s32 %s12, %s19
    %p21 = scmp.eq.s32.totalorder %s20, 0
    %s23 = sadd.s32 %s22, 1
    %s24 = scalar_select %p21, %s22, %s23
    %p27 = pneg %p21
    %p28 = scmp.eq.s32.totalorder %s12, 1
    %p29 = por %p27, %p28
    %p30 = scmp.ne.s32.totalorder %s22, %s25
    %p31 = scmp.eq.s32.totalorder %s12, 0
    %p32 = por %p30, %p31
    %p33 = scmp.ne.s32.totalorder %s22, %s25
    %p34 = scmp.eq.s32.totalorder %s17, 1
    %p35 = por %p33, %p34
    %p36 = scmp.ne.s32.totalorder %s25, %s26
    %p37 = scmp.eq.s32.totalorder %s17, 0
    %p38 = por %p36, %p37
    %p39 = scmp.ne.s32.totalorder %s25, %s26
    %p40 = scmp.eq.s32.totalorder %s18, 1
    %p41 = por %p39, %p40
    %p43 = scmp.ne.s32.totalorder %s26, %s42
    %p44 = scmp.eq.s32.totalorder %s18, 0
    %p45 = por %p43, %p44
    %s47 = sadd.s32 %s46, 1
    %p50 = scmp.eq.s32.totalorder %s12, 1
    %p51 = scmp.ne.s32.totalorder %s46, %s48
    %p52 = scmp.eq.s32.totalorder %s12, 0
    %p53 = por %p51, %p52
    %p54 = scmp.ne.s32.totalorder %s46, %s48
    %p55 = scmp.eq.s32.totalorder %s17, 1
    %p56 = por %p54, %p55
    %p57 = scmp.ne.s32.totalorder %s48, %s49
    %p58 = scmp.eq.s32.totalorder %s17, 0
    %p59 = por %p57, %p58
    %p60 = scmp.ne.s32.totalorder %s48, %s49
    %p61 = scmp.eq.s32.totalorder %s18, 1
    %p62 = por %p60, %p61
    %p64 = scmp.ne.s32.totalorder %s49, %s63
    %p65 = scmp.eq.s32.totalorder %s18, 0
    %p66 = por %p64, %p65
    %s67 = ssub.s32 %s12, %s19
    %p68 = scmp.eq.s32.totalorder %s67, 0
    %s70 = sadd.s32 %s69, 1
    %s71 = scalar_select %p68, %s69, %s70
    %p74 = pneg %p68
    %p75 = scmp.eq.s32.totalorder %s12, 1
    %p76 = por %p74, %p75
    %p77 = scmp.ne.s32.totalorder %s69, %s72
    %p78 = scmp.eq.s32.totalorder %s12, 0
    %p79 = por %p77, %p78
    %p80 = scmp.ne.s32.totalorder %s69, %s72
    %p81 = scmp.eq.s32.totalorder %s17, 1
    %p82 = por %p80, %p81
    %p83 = scmp.ne.s32.totalorder %s72, %s73
    %p84 = scmp.eq.s32.totalorder %s17, 0
    %p85 = por %p83, %p84
    %p86 = scmp.ne.s32.totalorder %s72, %s73
    %p87 = scmp.eq.s32.totalorder %s18, 1
    %p88 = por %p86, %p87
    %p90 = scmp.ne.s32.totalorder %s73, %s89
    %p91 = scmp.eq.s32.totalorder %s18, 0
    %p92 = por %p90, %p91
    %s94 = sadd.s32 %s93, 1
    %p97 = scmp.eq.s32.totalorder %s12, 1
    %p98 = scmp.ne.s32.totalorder %s93, %s95
    %p99 = scmp.eq.s32.totalorder %s12, 0
    %p100 = por %p98, %p99
    %p101 = scmp.ne.s32.totalorder %s93, %s95
    %p102 = scmp.eq.s32.totalorder %s17, 1
    %p103 = por %p101, %p102
    %p104 = scmp.ne.s32.totalorder %s95, %s96
    %p105 = scmp.eq.s32.totalorder %s17, 0
    %p106 = por %p104, %p105
    %p107 = scmp.ne.s32.totalorder %s95, %s96
    %p108 = scmp.eq.s32.totalorder %s18, 1
    %p109 = por %p107, %p108
    %p111 = scmp.ne.s32.totalorder %s96, %s110
    %p112 = scmp.eq.s32.totalorder %s18, 0
    %p113 = por %p111, %p112
    %s115 = sadd.s32 %s114, 1
    %p118 = scmp.eq.s32.totalorder %s12, 1
    %p119 = scmp.ne.s32.totalorder %s114, %s116
    %p120 = scmp.eq.s32.totalorder %s12, 0
    %p121 = por %p119, %p120
    %p122 = scmp.ne.s32.totalorder %s114, %s116
    %p123 = scmp.eq.s32.totalorder %s17, 1
    %p124 = por %p122, %p123
    %p125 = scmp.ne.s32.totalorder %s116, %s117
    %p126 = scmp.eq.s32.totalorder %s17, 0
    %p127 = por %p125, %p126
    %p128 = scmp.ne.s32.totalorder %s116, %s117
    %p129 = scmp.eq.s32.totalorder %s18, 1
    %p130 = por %p128, %p129
    %p132 = scmp.ne.s32.totalorder %s117, %s131
    %p133 = scmp.eq.s32.totalorder %s18, 0
    %p134 = por %p132, %p133
    %s136 = sadd.s32 %s135, 1
    %p139 = scmp.eq.s32.totalorder %s12, 1
    %p140 = scmp.ne.s32.totalorder %s135, %s137
    %p141 = scmp.eq.s32.totalorder %s12, 0
    %p142 = por %p140, %p141
    %p143 = scmp.ne.s32.totalorder %s135, %s137
    %p144 = scmp.eq.s32.totalorder %s17, 1
    %p145 = por %p143, %p144
    %p146 = scmp.ne.s32.totalorder %s137, %s138
    %p147 = scmp.eq.s32.totalorder %s17, 0
    %p148 = por %p146, %p147
    %p149 = scmp.ne.s32.totalorder %s137, %s138
    %p150 = scmp.eq.s32.totalorder %s18, 1
    %p151 = por %p149, %p150
    %p153 = scmp.ne.s32.totalorder %s138, %s152
    %p154 = scmp.eq.s32.totalorder %s18, 0
    %p155 = por %p153, %p154
    %s156 = ssub.s32 %s12, %s19
    %p157 = scmp.eq.s32.totalorder %s156, 0
    %s159 = sadd.s32 %s158, 1
    %s160 = scalar_select %p157, %s158, %s159
    %p163 = pneg %p157
    %p164 = scmp.eq.s32.totalorder %s12, 1
    %p165 = por %p163, %p164
    %p166 = scmp.ne.s32.totalorder %s158, %s161
    %p167 = scmp.eq.s32.totalorder %s12, 0
    %p168 = por %p166, %p167
    %p169 = scmp.ne.s32.totalorder %s158, %s161
    %p170 = scmp.eq.s32.totalorder %s17, 1
    %p171 = por %p169, %p170
    %p172 = scmp.ne.s32.totalorder %s161, %s162
    %p173 = scmp.eq.s32.totalorder %s17, 0
    %p174 = por %p172, %p173
    %p175 = scmp.ne.s32.totalorder %s161, %s162
    %p176 = scmp.eq.s32.totalorder %s18, 1
    %p177 = por %p175, %p176
    %p179 = scmp.ne.s32.totalorder %s162, %s178
    %p180 = scmp.eq.s32.totalorder %s18, 0
    %p181 = por %p179, %p180
    %p182 = scmp.le.s32.totalorder 1, %s12
    %p183 = scmp.lt.s32.totalorder %s12, 3
    %p184 = pnand %p182, %p183
    %p185 = pneg %p184
    // Predicated region
    $region9: #{tpu_custom_call.1} parent=5 // pred_check
      _
    $region10: #{tpu_custom_call.1} parent=5 // pred_check_branch
      %187 = sbr.rel (%p184) target = $region12
    $region11: #{tpu_custom_call.1} parent=5 // pred_region
      %s188 = ssub.s32 %s12, 1
      // Predicated region
      $region13: #{tpu_custom_call.1} parent=11 // pred_check
        %p189 = pneg %p59
      $region14: #{tpu_custom_call.1} parent=11 // pred_check_branch
        %191 = sbr.rel (%p189) target = $region16
      $region15: #{tpu_custom_call.1} parent=11 // pred_region
        _
      $region16: #{tpu_custom_call.1} parent=11 // pred_fallthru
        _
      // Predicated region
      $region17: #{tpu_custom_call.1} parent=11 // pred_check
        %p192 = pneg %p106
      $region18: #{tpu_custom_call.1} parent=11 // pred_check_branch
        %194 = sbr.rel (%p192) target = $region20
      $region19: #{tpu_custom_call.1} parent=11 // pred_region
        _
      $region20: #{tpu_custom_call.1} parent=11 // pred_fallthru
        _
      // Predicated region
      $region21: #{tpu_custom_call.1} parent=11 // pred_check
        %p195 = pneg %p127
      $region22: #{tpu_custom_call.1} parent=11 // pred_check_branch
        %197 = sbr.rel (%p195) target = $region24
      $region23: #{tpu_custom_call.1} parent=11 // pred_region
        _
      $region24: #{tpu_custom_call.1} parent=11 // pred_fallthru
        _
      // Predicated region
      $region25: #{tpu_custom_call.1} parent=11 // pred_check
        %p198 = pneg %p148
      $region26: #{tpu_custom_call.1} parent=11 // pred_check_branch
        %200 = sbr.rel (%p198) target = $region28
      $region27: #{tpu_custom_call.1} parent=11 // pred_region
        _
      $region28: #{tpu_custom_call.1} parent=11 // pred_fallthru
        _
    $region12: #{tpu_custom_call.1} parent=5 // pred_fallthru
      _
    %p201 = scmp.lt.s32.totalorder %s12, 2
    // Predicated region
    $region29: #{tpu_custom_call.1} parent=5 // pred_check
      %p202 = pneg %p201
    $region30: #{tpu_custom_call.1} parent=5 // pred_check_branch
      %204 = sbr.rel (%p202) target = $region32
    $region31: #{tpu_custom_call.1} parent=5 // pred_region
      // Predicated region
      $region33: #{tpu_custom_call.1} parent=31 // pred_check
        %p205 = pneg %p32
      $region34: #{tpu_custom_call.1} parent=31 // pred_check_branch
        %207 = sbr.rel (%p205) target = $region36
      $region35: #{tpu_custom_call.1} parent=31 // pred_region
        %p208 = scmp.lt.s32.totalorder %s12, 1
        %s209 = scalar_select %p208, %s12, 1
        %s210 = smul.addr %s209, 4
        %s211 = scalar_lea.vmem %s0, %s210
      $region36: #{tpu_custom_call.1} parent=31 // pred_fallthru
        _
      // Predicated region
      $region37: #{tpu_custom_call.1} parent=31 // pred_check
        %p212 = pneg %p79
      $region38: #{tpu_custom_call.1} parent=31 // pred_check_branch
        %214 = sbr.rel (%p212) target = $region40
      $region39: #{tpu_custom_call.1} parent=31 // pred_region
        %p215 = scmp.lt.s32.totalorder %s12, 1
        %s216 = scalar_select %p215, %s12, 1
        %s217 = smul.addr %s216, 8
        %s218 = scalar_lea.vmem %s2, %s217
      $region40: #{tpu_custom_call.1} parent=31 // pred_fallthru
        _
    $region32: #{tpu_custom_call.1} parent=5 // pred_fallthru
      _
    %p219 = scmp.le.s32.totalorder 1, %s12
    %p220 = scmp.lt.s32.totalorder %s12, 3
    %p221 = pnand %p219, %p220
    %p222 = pneg %p221
    // Predicated region
    $region41: #{tpu_custom_call.1} parent=5 // pred_check
      _
    $region42: #{tpu_custom_call.1} parent=5 // pred_check_branch
      %224 = sbr.rel (%p221) target = $region44
    $region43: #{tpu_custom_call.1} parent=5 // pred_region
      %s225 = ssub.s32 %s12, 1
      %p226 = scmp.lt.s32.totalorder %s17, 1
      %s227 = scalar_select %p226, %s17, 1
      %s228 = smul.addr %s227, 4
      %s229 = scalar_lea.vmem %s0, %s228
      %p230 = pneg %p38
      %p231 = pneg %p35
      %p232 = pneg %p59
      %p233 = pneg %p56
      %p234 = scmp.lt.s32.totalorder %s17, 1
      %s235 = scalar_select %p234, %s17, 1
      %s236 = smul.addr %s235, 8
      %s237 = scalar_lea.vmem %s2, %s236
      %p238 = pneg %p85
      %p239 = pneg %p82
      %p240 = pneg %p106
      %p241 = pneg %p103
      %p242 = pneg %p127
      %p243 = pneg %p124
      %p244 = pneg %p148
      %p245 = pneg %p145
      %p246 = pneg %p174
      %p247 = pneg %p171
      %p248 = scmp.lt.s32.totalorder %s17, 1
      %s249 = scalar_select %p248, %s17, 1
      %s250 = smul.addr %s249, 8
      %s251 = scalar_lea.vmem %s6, %s250
      %p252 = scmp.lt.s32.totalorder %s17, 1
      %s253 = scalar_select %p252, %s17, 1
      %s254 = smul.addr %s253, 4
      %s255 = scalar_lea.vmem %s0, %s254
      %p256 = scmp.lt.s32.totalorder %s17, 1
      %s257 = scalar_select %p256, %s17, 1
      %s258 = smul.addr %s257, 8
      %s259 = scalar_lea.vmem %s2, %s258
      %p260 = scmp.lt.s32.totalorder %s17, 1
      %s261 = scalar_select %p260, %s17, 1
      %s262 = smul.addr %s261, 8
      %s263 = scalar_lea.vmem %s6, %s262
      %v266 = vld [vmem:[%s255] sm:$0xf]
      %v267 = vunpack.c.l.bf16 %v266
      %v268 = vmul.bf16 %v266, 3221274624
      %v269 = vld [vmem:[%s259] sm:$0xff]
      %v270 = vlaneseq
      %v271 = vand.u32 %v270, 127
      %v272 = vld [vmem:[%s1] sm:$0xf]
      %v273 = vld [vmem:[%s1 + $0x4] sm:$0xf]
      %v274 = vld [vmem:[%s1 + $0x8] sm:$0xf]
      %v275 = vld [vmem:[%s1 + $0xc] sm:$0xf]
      %v276 = vld [vmem:[%s1 + $0x10] sm:$0xf]
      %v277 = vld [vmem:[%s1 + $0x14] sm:$0xf]
      %v278 = vld [vmem:[%s1 + $0x18] sm:$0xf]
      %v279 = vld [vmem:[%s1 + $0x1c] sm:$0xf]
      %v280 = vld [vmem:[%s1 + $0x20] sm:$0xf]
      %v281 = vld [vmem:[%s1 + $0x24] sm:$0xf]
      %v282 = vld [vmem:[%s1 + $0x28] sm:$0xf]
      %v283 = vld [vmem:[%s1 + $0x2c] sm:$0xf]
      %v284 = vld [vmem:[%s1 + $0x30] sm:$0xf]
      %v285 = vld [vmem:[%s1 + $0x34] sm:$0xf]
      %v286 = vld [vmem:[%s1 + $0x38] sm:$0xf]
      %v287 = vld [vmem:[%s1 + $0x3c] sm:$0xf]
      %v304 = vunpack.c.l.b16 %v272
      %v305 = vunpack.c.l.b16 %v273
      %v306 = vunpack.c.l.b16 %v274
      %v307 = vunpack.c.l.b16 %v275
      %v308 = vunpack.c.l.b16 %v276
      %v309 = vunpack.c.l.b16 %v277
      %v310 = vunpack.c.l.b16 %v278
      %v311 = vunpack.c.l.b16 %v279
      %v312 = vunpack.c.l.b16 %v280
      %v313 = vunpack.c.l.b16 %v281
      %v314 = vunpack.c.l.b16 %v282
      %v315 = vunpack.c.l.b16 %v283
      %v316 = vunpack.c.l.b16 %v284
      %v317 = vunpack.c.l.b16 %v285
      %v318 = vunpack.c.l.b16 %v286
      %v319 = vunpack.c.l.b16 %v287
      %v320 = vpack.c.b16 %v305, %v304
      %v321 = vpack.c.b16 %v307, %v306
      %v322 = vpack.c.b16 %v309, %v308
      %v323 = vpack.c.b16 %v311, %v310
      %v324 = vpack.c.b16 %v313, %v312
      %v325 = vpack.c.b16 %v315, %v314
      %v326 = vpack.c.b16 %v317, %v316
      %v327 = vpack.c.b16 %v319, %v318
      %vm328 = vcmask 261120
      %v330 = vsel %vm328, %v268, 0
      %v333 = vsel %vm328, %v320, 0
      %v336 = vsel %vm328, %v321, 0
      %v339 = vsel %vm328, %v322, 0
      %v342 = vsel %vm328, %v323, 0
      %v345 = vsel %vm328, %v324, 0
      %v348 = vsel %vm328, %v325, 0
      %v351 = vsel %vm328, %v326, 0
      %v354 = vsel %vm328, %v327, 0
      %356 = vmatprep.subr.bf16.mxu0 0
      %357 = vmatpush1.bf16.xpose.msra.mxu0 %v333
      %358 = vmatprep.subr.bf16.mxu0 0
      %359 = vmatpush1.bf16.xpose.msra.mxu0 %v336
      %360 = vmatprep.subr.bf16.mxu0 0
      %361 = vmatpush1.bf16.xpose.msra.mxu0 %v339
      %362 = vmatprep.subr.bf16.mxu0 0
      %363 = vmatpush1.bf16.xpose.msra.mxu0 %v342
      %364 = vmatprep.subr.bf16.mxu0 0
      %365 = vmatpush1.bf16.xpose.msra.mxu0 %v345
      %366 = vmatprep.subr.bf16.mxu0 0
      %367 = vmatpush1.bf16.xpose.msra.mxu0 %v348
      %368 = vmatprep.subr.bf16.mxu0 0
      %369 = vmatpush1.bf16.xpose.msra.mxu0 %v351
      %370 = vmatprep.subr.bf16.mxu0 0
      %371 = vmatpush1.bf16.xpose.msra.mxu0 %v354
      %372 = vmatprep.subr.bf16.mxu0 0
      %373 = vmatpush1.bf16.xpose.msra.mxu0 0
      %374 = vmatprep.subr.bf16.mxu0 0
      %375 = vmatpush1.bf16.xpose.msra.mxu0 0
      %376 = vmatprep.subr.bf16.mxu0 0
      %377 = vmatpush1.bf16.xpose.msra.mxu0 0
      %378 = vmatprep.subr.bf16.mxu0 0
      %379 = vmatpush1.bf16.xpose.msra.mxu0 0
      %380 = vmatprep.subr.bf16.mxu0 0
      %381 = vmatpush1.bf16.xpose.msra.mxu0 0
      %382 = vmatprep.subr.bf16.mxu0 0
      %383 = vmatpush1.bf16.xpose.msra.mxu0 0
      %384 = vmatprep.subr.bf16.mxu0 0
      %385 = vmatpush1.bf16.xpose.msra.mxu0 0
      %386 = vmatprep.subr.bf16.mxu0 0
      %387 = vmatpush1.bf16.xpose.msra.mxu0 0
      %388 = vmatprep.mubr.bf16.mxu0 0
      %389 = vmatmul.mubr.bf16.gmra.mrb[0].mxu0 %v330
      %v390 = vpop.f32.mrb[0].mxu0
      %v391 = vadd.f32 0.0, %v390
      %v392 = vpop.f32.mrb[0].mxu0
      %v393 = vpop.f32.mrb[0].mxu0
      %v394 = vpop.f32.mrb[0].mxu0
      %395 = vdwg.mxu0
      %v396 = vld [vmem:[%s3] sm:$0x1]
      %397 = vset.pattern.permute.xlu0 0
      %398 = vperm.xlu0 %397, %v269
      %v399 = vpop.permute.xlu0 %398
      %v400 = vlaneseq
      %v401 = vshrl.u32 %v400, 7
      %v402 = vsub.s32 0, %v401
      %v403 = vrot.slane %v396, %v402
      %vm404 = vcmp.eq.s32.totalorder %v399, %v403
      %v405 = vld [vmem:[%s4] sm:$0x1]
      %v407 = vlaneseq
      %v408 = vshrl.u32 %v407, 7
      %v409 = vsub.s32 0, %v408
      %v410 = vrot.slane %v405, %v409
      %v412 = vadd.f32 %v391, %v410
      %v413 = vsel %vm404, 0.0, -9999999.0
      %v414 = vadd.f32 %v412, %v413
      %v415 = vld [vmem:[%s5] sm:$0x1]
      %v417 = vlaneseq
      %v418 = vshrl.u32 %v417, 7
      %v419 = vsub.s32 0, %v418
      %v420 = vrot.slane %v415, %v419
      %v422 = vadd.f32 %v391, %v420
      %v423 = vsel %vm404, 9999999.0, 0.0
      %v424 = vadd.f32 %v422, %v423
      %425 = vmax.xlane.f32.xlu0 %v414
      %v426 = vpop.xlane.xlu0 %425
      %vm427 = vcmp.eq.f32.partialorder %v414, %v426
      %v428 = vsel %vm427, %v271, 128
      %v429 = vand.u32 %v428, 65535
      %v430 = vshra.s32 %v428, 16
      %v431 = vcvt.s32.f32 %v429
      %v432 = vcvt.s32.f32 %v430
      %433 = vmin.xlane.f32.xlu0 %v432
      %v434 = vpop.xlane.xlu0 %433
      %vm435 = vcmp.eq.f32.partialorder %v432, %v434
      %v436 = vsel %vm435, %v431, inf
      %437 = vmin.xlane.f32.xlu0 %v436
      %v438 = vpop.xlane.xlu0 %437
      %v439 = vcvt.f32.s32 %v438
      %v440 = vcvt.f32.s32 %v434
      %v441 = vshll.u32 %v440, 16
      %v442 = vadd.s32 %v441, %v439
      %443 = vmin.xlane.f32.xlu0 %v424
      %v444 = vpop.xlane.xlu0 %443
      %vm445 = vcmp.eq.f32.partialorder %v424, %v444
      %v446 = vsel %vm445, %v271, 128
      %v447 = vand.u32 %v446, 65535
      %v448 = vshra.s32 %v446, 16
      %v449 = vcvt.s32.f32 %v447
      %v450 = vcvt.s32.f32 %v448
      %451 = vmin.xlane.f32.xlu0 %v450
      %v452 = vpop.xlane.xlu0 %451
      %vm453 = vcmp.eq.f32.partialorder %v450, %v452
      %v454 = vsel %vm453, %v449, inf
      %455 = vmin.xlane.f32.xlu0 %v454
      %v456 = vpop.xlane.xlu0 %455
      %v457 = vcvt.f32.s32 %v456
      %v458 = vcvt.f32.s32 %v452
      %v459 = vshll.u32 %v458, 16
      %v460 = vadd.s32 %v459, %v457
      %v461 = vmax.f32 %v426, -1e+30
      %vm462 = vcmp.eq.f32.partialorder %v426, %v461
      %v463 = vsel %vm462, %v442, 2147483647
      %v464 = vmin.f32 %v444, 1e+30
      %vm465 = vcmp.eq.f32.partialorder %v444, %v464
      %v466 = vsel %vm465, %v460, 2147483647
      %vm467 = vcmp.eq.s32.totalorder %v271, %v463
      %vm468 = vcmp.eq.s32.totalorder %v271, %v466
      %v469 = vsel %vm467, 1, 0
      %v470 = vcvt.s32.f32 %v469
      %v471 = vpack.c.bf16 %v470, %v470
      %480 = vmatprep.subr.bf16.mxu0 0
      %481 = vmatpush1.bf16.msra.mxu0 %v320
      %482 = vmatprep.subr.bf16.mxu0 0
      %483 = vmatpush1.bf16.msra.mxu0 %v321
      %484 = vmatprep.subr.bf16.mxu0 0
      %485 = vmatpush1.bf16.msra.mxu0 %v322
      %486 = vmatprep.subr.bf16.mxu0 0
      %487 = vmatpush1.bf16.msra.mxu0 %v323
      %488 = vmatprep.subr.bf16.mxu0 0
      %489 = vmatpush1.bf16.msra.mxu0 %v324
      %490 = vmatprep.subr.bf16.mxu0 0
      %491 = vmatpush1.bf16.msra.mxu0 %v325
      %492 = vmatprep.subr.bf16.mxu0 0
      %493 = vmatpush1.bf16.msra.mxu0 %v326
      %494 = vmatprep.subr.bf16.mxu0 0
      %495 = vmatpush1.bf16.msra.mxu0 %v327
      %496 = vmatprep.subr.bf16.mxu0 0
      %497 = vmatpush1.bf16.msra.mxu0 0
      %498 = vmatprep.subr.bf16.mxu0 0
      %499 = vmatpush1.bf16.msra.mxu0 0
      %500 = vmatprep.subr.bf16.mxu0 0
      %501 = vmatpush1.bf16.msra.mxu0 0
      %502 = vmatprep.subr.bf16.mxu0 0
      %503 = vmatpush1.bf16.msra.mxu0 0
      %504 = vmatprep.subr.bf16.mxu0 0
      %505 = vmatpush1.bf16.msra.mxu0 0
      %506 = vmatprep.subr.bf16.mxu0 0
      %507 = vmatpush1.bf16.msra.mxu0 0
      %508 = vmatprep.subr.bf16.mxu0 0
      %509 = vmatpush1.bf16.msra.mxu0 0
      %510 = vmatprep.subr.bf16.mxu0 0
      %511 = vmatpush1.bf16.msra.mxu0 0
      %512 = vmatprep.mubr.bf16.mxu0 0
      %513 = vmatmul.mubr.bf16.gmra.mrb[0].mxu0 %v471
      %v514 = vpop.f32.mrb[0].mxu0
      %v515 = vadd.f32 0.0, %v514
      %v516 = vpop.f32.mrb[0].mxu0
      %v517 = vpop.f32.mrb[0].mxu0
      %v518 = vpop.f32.mrb[0].mxu0
      %519 = vdwg.mxu0
      %v520 = vsel %vm468, 1, 0
      %v521 = vcvt.s32.f32 %v520
      %v522 = vpack.c.bf16 %v521, %v521
      %523 = vmatprep.subr.bf16.mxu0 0
      %524 = vmatpush1.bf16.msra.mxu0 %v320
      %525 = vmatprep.subr.bf16.mxu0 0
      %526 = vmatpush1.bf16.msra.mxu0 %v321
      %527 = vmatprep.subr.bf16.mxu0 0
      %528 = vmatpush1.bf16.msra.mxu0 %v322
      %529 = vmatprep.subr.bf16.mxu0 0
      %530 = vmatpush1.bf16.msra.mxu0 %v323
      %531 = vmatprep.subr.bf16.mxu0 0
      %532 = vmatpush1.bf16.msra.mxu0 %v324
      %533 = vmatprep.subr.bf16.mxu0 0
      %534 = vmatpush1.bf16.msra.mxu0 %v325
      %535 = vmatprep.subr.bf16.mxu0 0
      %536 = vmatpush1.bf16.msra.mxu0 %v326
      %537 = vmatprep.subr.bf16.mxu0 0
      %538 = vmatpush1.bf16.msra.mxu0 %v327
      %539 = vmatprep.subr.bf16.mxu0 0
      %540 = vmatpush1.bf16.msra.mxu0 0
      %541 = vmatprep.subr.bf16.mxu0 0
      %542 = vmatpush1.bf16.msra.mxu0 0
      %543 = vmatprep.subr.bf16.mxu0 0
      %544 = vmatpush1.bf16.msra.mxu0 0
      %545 = vmatprep.subr.bf16.mxu0 0
      %546 = vmatpush1.bf16.msra.mxu0 0
      %547 = vmatprep.subr.bf16.mxu0 0
      %548 = vmatpush1.bf16.msra.mxu0 0
      %549 = vmatprep.subr.bf16.mxu0 0
      %550 = vmatpush1.bf16.msra.mxu0 0
      %551 = vmatprep.subr.bf16.mxu0 0
      %552 = vmatpush1.bf16.msra.mxu0 0
      %553 = vmatprep.subr.bf16.mxu0 0
      %554 = vmatpush1.bf16.msra.mxu0 0
      %555 = vmatprep.mubr.bf16.mxu0 0
      %556 = vmatmul.mubr.bf16.gmra.mrb[0].mxu0 %v522
      %v557 = vpop.f32.mrb[0].mxu0
      %v558 = vadd.f32 0.0, %v557
      %v559 = vpop.f32.mrb[0].mxu0
      %v560 = vpop.f32.mrb[0].mxu0
      %v561 = vpop.f32.mrb[0].mxu0
      %562 = vdwg.mxu0
      %v563 = vsub.f32 %v267, %v515
      %v564 = vsub.f32 %v267, %v558
      %v565 = vmul.f32 %v563, %v563
      %v566 = vsel %vm328, %v565, 0.0
      %567 = vadd.xlane.f32.xlu0 %v566
      %v568 = vpop.xlane.xlu0 %567
      %v569 = vrsqrt.pop %v568
      %v570 = vmul.f32 %v568, %v569
      %vm571 = vcmp.eq.f32.partialorder %v568, inf
      %v572 = vsel %vm571, %v568, %v570
      %vm573 = vcmp.eq.f32.partialorder %v568, 0.0
      %v574 = vand.u32 %v568, 2147483648
      %v575 = vsel %vm573, %v574, %v572
      %v576 = vmul.f32 %v564, %v564
      %v577 = vsel %vm328, %v576, 0.0
      %578 = vadd.xlane.f32.xlu0 %v577
      %v579 = vpop.xlane.xlu0 %578
      %v580 = vrsqrt.pop %v579
      %v581 = vmul.f32 %v579, %v580
      %vm582 = vcmp.eq.f32.partialorder %v579, inf
      %v583 = vsel %vm582, %v579, %v581
      %vm584 = vcmp.eq.f32.partialorder %v579, 0.0
      %v585 = vand.u32 %v579, 2147483648
      %v586 = vsel %vm584, %v585, %v583
      %v587 = vmax.f32 %v575, %v586
      %v588 = vsub.f32 %v575, %v587
      %v589 = vmul.f32 %v588, 1.442695
      %v590 = vpow.pop %v589
      %v591 = vsub.f32 %v586, %v587
      %v592 = vmul.f32 %v591, 1.442695
      %v593 = vpow.pop %v592
      %v594 = vadd.f32 %v590, %v593
      %v595 = vlog2.pop %v594
      %v596 = vmul.f32 %v595, 0.6931472
      %v597 = vadd.f32 %v587, %v596
      %v598 = vsub.f32 %v575, %v597
      %v599 = vmul.f32 %v598, -0.0
      %v600 = vsub.f32 %v586, %v597
      %v601 = vsub.f32 %v599, %v600
      %vm602 = vcmask 7168
      %603 = vst.msk [vmem:[%s263] sm:$0xff] %vm602, %v601
      %p604 = scmp.lt.s32.totalorder %s17, 1
      %s605 = scalar_select %p604, %s17, 1
      %s606 = smul.addr %s605, 8
      %s607 = scalar_lea.vmem %s6, %s606
      // Predicated region
      $region45: #{tpu_custom_call.1} parent=43 // pred_check
        %p608 = pneg %p171
      $region46: #{tpu_custom_call.1} parent=43 // pred_check_branch
        %610 = sbr.rel (%p608) target = $region48
      $region47: #{tpu_custom_call.1} parent=43 // pred_region
        _
      $region48: #{tpu_custom_call.1} parent=43 // pred_fallthru
        _
    $region44: #{tpu_custom_call.1} parent=5 // pred_fallthru
      _
    %p611 = scmp.le.s32.totalorder 2, %s12
    // Predicated region
    $region49: #{tpu_custom_call.1} parent=5 // pred_check
      %p612 = pneg %p611
    $region50: #{tpu_custom_call.1} parent=5 // pred_check_branch
      %614 = sbr.rel (%p612) target = $region52
    $region51: #{tpu_custom_call.1} parent=5 // pred_region
      %s615 = ssub.s32 %s12, 2
      // Predicated region
      $region53: #{tpu_custom_call.1} parent=51 // pred_check
        %p616 = pneg %p177
      $region54: #{tpu_custom_call.1} parent=51 // pred_check_branch
        %618 = sbr.rel (%p616) target = $region56
      $region55: #{tpu_custom_call.1} parent=51 // pred_region
        %p619 = scmp.lt.s32.totalorder %s18, 1
        %s620 = scalar_select %p619, %s18, 1
        %s621 = smul.addr %s620, 8
        %s622 = scalar_lea.vmem %s6, %s621
      $region56: #{tpu_custom_call.1} parent=51 // pred_fallthru
        _
    $region52: #{tpu_custom_call.1} parent=5 // pred_fallthru
      _
  $region6: #{tpu_custom_call.1} parent=0 // loop_footer
    %s16 = sadd.s32 1, %s12
  $region7: #{tpu_custom_call.1} parent=0 // loop_footer_branch
    %11 = sbr.rel target = $region3
  $region8: #{tpu_custom_call.1} parent=0 // loop_exit
    _

</llo_original>
